<compile_context>
chip_gen: v7x
topology: tpu7x:2x2x1
jax: 0.10.0
libtpu: 0.0.40
codegen_flags: <defaults>
</compile_context>

<pallas_src>
import math

import jax
import jax.numpy as jnp
from jax.experimental import pallas as pl
from jax.experimental.pallas import tpu as pltpu


def _dconv_synaps_kernel(x_ref, a_hi_ref, a_lo_ref, q_ref, o_ref):
    # x_ref       : (TR, g*9)  grouped input rows
    # a_hi/a_lo   : (g*9, TF)  bf16 hi/lo split of the (k/2)-scaled block-diag A
    # q_ref       : (1, TF)    f32 bias = -(k/2) * q, tiled over the g groups
    # o_ref       : (TR, TF)   lane-dense output slab
    x = x_ref[...].astype(jnp.float32)
    x_hi = x.astype(jnp.bfloat16)
    x_lo = (x - x_hi.astype(jnp.float32)).astype(jnp.bfloat16)
    a_hi = a_hi_ref[...]
    a_lo = a_lo_ref[...]
    # Manual bf16_3x (== lax.Precision.HIGH): three native bf16 MXU passes,
    # f32 accumulation; dot error ~2^-21 relative -> far below 1e-4 tolerance.
    z = jnp.dot(x_hi, a_hi, preferred_element_type=jnp.float32)
    z = z + jnp.dot(x_lo, a_hi, preferred_element_type=jnp.float32)
    z = z + jnp.dot(x_hi, a_lo, preferred_element_type=jnp.float32)
    z = z + q_ref[...]
    # sigmoid(k*(x*W - q)) == 0.5 + 0.5*tanh((k/2)*(x*W - q)); single EUP op.
    o_ref[...] = (0.5 * jnp.tanh(z) + 0.5).astype(o_ref.dtype)


def dconv_synaps(x, W, q, *, k=10.0, out_dtype=None,
                 vmem_block_budget_bytes=4 * 1024 * 1024):
    """y[b,c,d,i,j] = sigmoid(k*(x[b,c,i]*W[d,i,j] - q[d,i,j])), like DConvSynaps."""
    assert x.ndim == 3 and x.shape[-1] == 9, "expected x of shape (B, C, 9)"
    assert W.shape == q.shape and W.shape[-2:] == (9, 8)
    B, C, _ = x.shape
    D = W.shape[0]
    F = D * 9 * 8
    R = B * C

    if out_dtype is None:
        # Matches torch promotion (f32 in the default setup).
        out_dtype = jnp.promote_types(jnp.promote_types(x.dtype, W.dtype), q.dtype)

    # ---- fold broadcast + W scale + sign + k/2 into one matmul and a bias ----
    #   A[i, f] = (k/2) * W_flat[f]  if i == i(f) else 0,   f = d*72 + i*8 + j
    #   bias[f] = -(k/2) * q_flat[f]
    khalf = 0.5 * float(k)
    w_flat = W.astype(jnp.float32).reshape(F)
    i_of_f = (jnp.arange(F) % 72) // 8
    a_mat = (jnp.arange(9)[:, None] == i_of_f[None, :]).astype(jnp.float32)
    a_mat = a_mat * (khalf * w_flat)[None, :]                    # (9, F)
    q_bias = (-khalf) * q.astype(jnp.float32).reshape(1, F)      # (1, F)

    # ---- lane-dense row grouping: g original rows per kernel row ------------
    g = 128 // math.gcd(F, 128)          # F is a multiple of 8 -> g <= 16
    gK, gF = g * 9, g * F
    if g > 1:
        a_mat = jnp.kron(jnp.eye(g, dtype=jnp.float32), a_mat)   # (gK, gF)
        q_bias = jnp.tile(q_bias, (1, g))                        # (1, gF)
    # bf16 hi/lo split of A, precomputed once (constant across the grid).
    a_hi = a_mat.astype(jnp.bfloat16)
    a_lo = (a_mat - a_hi.astype(jnp.float32)).astype(jnp.bfloat16)

    R_pad = ((R + g - 1) // g) * g       # pads at most g-1 (<16) rows
    x2 = x.reshape(R, 9)
    if R_pad != R:
        x2 = jnp.pad(x2, ((0, R_pad - R), (0, 0)))
    Rg = R_pad // g
    xg = x2.reshape(Rg, gK)

    # ---- lane (F) tiling: only needed when g == 1, i.e. D % 16 == 0 ---------
    if g == 1 and F > 4608:
        tf = 1152                        # 16 dendrites; 1152 always divides F here
    else:
        tf = gF                          # gF is a multiple of 128 by construction
    grid_f = gF // tf

    # ---- row tiling from a per-block VMEM budget -----------------------------
    lane_pad = lambda n: ((n + 127) // 128) * 128
    sub_of = lambda dt: {4: 8, 2: 16, 1: 32}.get(jnp.dtype(dt).itemsize, 8)
    sub = max(sub_of(x.dtype), sub_of(out_dtype))
    per_row_bytes = (lane_pad(gK) * jnp.dtype(x.dtype).itemsize
                     + lane_pad(tf) * jnp.dtype(out_dtype).itemsize)
    tr_max = max(sub, (vmem_block_budget_bytes // per_row_bytes) // sub * sub)
    tr = Rg if Rg <= tr_max else tr_max
    grid_r = pl.cdiv(Rg, tr)             # partial last block: rows independent

    out2d = pl.pallas_call(
        _dconv_synaps_kernel,
        out_shape=jax.ShapeDtypeStruct((Rg, gF), out_dtype),
        grid_spec=pltpu.PrefetchScalarGridSpec(
            num_scalar_prefetch=0,
            grid=(grid_r, grid_f),
            in_specs=[
                pl.BlockSpec((tr, gK), lambda i, j: (i, 0)),   # grouped x rows
                pl.BlockSpec((gK, tf), lambda i, j: (0, j)),   # A hi (bf16)
                pl.BlockSpec((gK, tf), lambda i, j: (0, j)),   # A lo (bf16)
                pl.BlockSpec((1, tf), lambda i, j: (0, j)),    # bias (f32)
            ],
            out_specs=pl.BlockSpec((tr, tf), lambda i, j: (i, j)),
        ),
        compiler_params=pltpu.CompilerParams(
            # Independent blocks; on v7x the row axis can shard across the two
            # TensorCores (check a trace; use pltpu.CORE_PARALLEL if plain
            # "parallel" does not split it).
            dimension_semantics=("parallel", "parallel"),
            # Covers the double-buffered ~4 MiB blocks on v5e's 16 MiB scoped
            # default while staying well under v7x's 64 MiB physical VMEM.
            vmem_limit_bytes=32 * 1024 * 1024,
        ),
    )(xg, a_hi, a_lo, q_bias)

    # (Rg, g*F) and (R_pad, F) share the same HBM layout; drop padded rows and
    # restore (B, C, D, 9, 8) — the minor feature order is already (d, i, j).
    return out2d.reshape(R_pad, F)[:R].reshape(B, C, D, 9, 8)


def dconv_synaps_ref(x, W, q, k=10.0):
    xe = x.astype(jnp.float32)[:, :, None, :, None]        # (B, C, 1, 9, 1)
    z = (xe * W.astype(jnp.float32)[None, None]
         - q.astype(jnp.float32)[None, None]) * k
    return jax.nn.sigmoid(z)


if __name__ == "__main__":
    key = jax.random.PRNGKey(0)
    kx, kw, kq = jax.random.split(key, 3)

    # Shapes implied by the module: x is (batch, x_width, 9); params (dendrite, 9, 8).
    B, C, D = 2, 4, 1
    k = 10.0
    x = jax.random.uniform(kx, (B, C, 9), dtype=jnp.float32)
    W = 0.01 * jax.random.normal(kw, (D, 9, 8), dtype=jnp.float32) + 0.2
    q = 0.01 * jax.random.normal(kq, (D, 9, 8), dtype=jnp.float32) + 0.0

    y = dconv_synaps(x, W, q, k=k)
    y = jax.block_until_ready(y)

    y_ref = dconv_synaps_ref(x, W, q, k=k)
    assert y.shape == (B, C, D, 9, 8), y.shape
    err = float(jnp.max(jnp.abs(y.astype(jnp.float32) - y_ref)))
    assert jnp.allclose(y.astype(jnp.float32), y_ref, atol=1e-4, rtol=1e-4), err
    print("KERNEL_OK")
</pallas_src>

<mosaic_0001>
module attributes {stable_mosaic.version = 11 : i64} {
  func.func @_dconv_synaps_kernel(%arg0: i32, %arg1: i32, %arg2: memref<1x144xf32, #tpu.memory_space<vmem>>, %arg3: memref<144x1152xbf16, #tpu.memory_space<vmem>>, %arg4: memref<144x1152xbf16, #tpu.memory_space<vmem>>, %arg5: memref<1x1152xf32, #tpu.memory_space<vmem>>, %arg6: memref<1x1152xf32, #tpu.memory_space<vmem>>) attributes {dimension_semantics = [#tpu.dimension_semantics<parallel>, #tpu.dimension_semantics<parallel>], iteration_bounds = array<i64: 1, 1>, scalar_prefetch = 0 : i64, scratch_operands = 0 : i64, tpu.core_type = #tpu.core_type<tc>, window_params = [{transform_indices = @transform_0, window_bounds = array<i64: 1, 144>}, {transform_indices = @transform_1, window_bounds = array<i64: 144, 1152>}, {transform_indices = @transform_2, window_bounds = array<i64: 144, 1152>}, {transform_indices = @transform_3, window_bounds = array<i64: 1, 1152>}, {transform_indices = @transform_4, window_bounds = array<i64: 1, 1152>}]} {
    %c0 = arith.constant 0 : index
    %c0_0 = arith.constant 0 : index
    %0 = vector.load %arg2[%c0, %c0_0] : memref<1x144xf32, #tpu.memory_space<vmem>>, vector<1x144xf32>
    %1 = arith.truncf %0 : vector<1x144xf32> to vector<1x144xbf16>
    %2 = arith.extf %1 : vector<1x144xbf16> to vector<1x144xf32>
    %3 = arith.subf %0, %2 : vector<1x144xf32>
    %4 = arith.truncf %3 : vector<1x144xf32> to vector<1x144xbf16>
    %c0_1 = arith.constant 0 : index
    %c0_2 = arith.constant 0 : index
    %5 = vector.load %arg3[%c0_1, %c0_2] : memref<144x1152xbf16, #tpu.memory_space<vmem>>, vector<144x1152xbf16>
    %c0_3 = arith.constant 0 : index
    %c0_4 = arith.constant 0 : index
    %6 = vector.load %arg4[%c0_3, %c0_4] : memref<144x1152xbf16, #tpu.memory_space<vmem>>, vector<144x1152xbf16>
    %cst = arith.constant dense<0.000000e+00> : vector<1x1152xf32>
    %7 = tpu.matmul %1, %5, %cst {dimension_numbers = #tpu.dot_dimension_numbers<[1], [0], [0], [1], [0, 0, 1, 1], [], []>} : vector<1x144xbf16>, vector<144x1152xbf16>, vector<1x1152xf32> -> vector<1x1152xf32>
    %cst_5 = arith.constant dense<0.000000e+00> : vector<1x1152xf32>
    %8 = tpu.matmul %4, %5, %cst_5 {dimension_numbers = #tpu.dot_dimension_numbers<[1], [0], [0], [1], [0, 0, 1, 1], [], []>} : vector<1x144xbf16>, vector<144x1152xbf16>, vector<1x1152xf32> -> vector<1x1152xf32>
    %9 = arith.addf %7, %8 : vector<1x1152xf32>
    %cst_6 = arith.constant dense<0.000000e+00> : vector<1x1152xf32>
    %10 = tpu.matmul %1, %6, %cst_6 {dimension_numbers = #tpu.dot_dimension_numbers<[1], [0], [0], [1], [0, 0, 1, 1], [], []>} : vector<1x144xbf16>, vector<144x1152xbf16>, vector<1x1152xf32> -> vector<1x1152xf32>
    %11 = arith.addf %9, %10 : vector<1x1152xf32>
    %c0_7 = arith.constant 0 : index
    %c0_8 = arith.constant 0 : index
    %12 = vector.load %arg5[%c0_7, %c0_8] : memref<1x1152xf32, #tpu.memory_space<vmem>>, vector<1x1152xf32>
    %13 = arith.addf %11, %12 : vector<1x1152xf32>
    %14 = math.tanh %13 : vector<1x1152xf32>
    %cst_9 = arith.constant 5.000000e-01 : f32
    %15 = vector.broadcast %cst_9 : f32 to vector<1x1152xf32>
    %16 = arith.mulf %15, %14 : vector<1x1152xf32>
    %cst_10 = arith.constant 5.000000e-01 : f32
    %17 = vector.broadcast %cst_10 : f32 to vector<1x1152xf32>
    %18 = arith.addf %16, %17 : vector<1x1152xf32>
    %c0_11 = arith.constant 0 : index
    %c0_12 = arith.constant 0 : index
    %19 = vector.load %arg6[%c0_11, %c0_12] : memref<1x1152xf32, #tpu.memory_space<vmem>>, vector<1x1152xf32>
    tpu.vector_store %arg6[%c0_11, %c0_12], %18 {strides = array<i32>} : memref<1x1152xf32, #tpu.memory_space<vmem>>, vector<1x1152xf32>,
    return
  }
  func.func @transform_0(%arg0: i32, %arg1: i32) -> (i32, i32) {
    %c0_i32 = arith.constant 0 : i32
    %c0_i32_0 = arith.constant 0 : i32
    return %arg0, %c0_i32 : i32, i32
  }
  func.func @transform_1(%arg0: i32, %arg1: i32) -> (i32, i32) {
    %c0_i32 = arith.constant 0 : i32
    %c0_i32_0 = arith.constant 0 : i32
    return %c0_i32, %arg1 : i32, i32
  }
  func.func @transform_2(%arg0: i32, %arg1: i32) -> (i32, i32) {
    %c0_i32 = arith.constant 0 : i32
    %c0_i32_0 = arith.constant 0 : i32
    return %c0_i32, %arg1 : i32, i32
  }
  func.func @transform_3(%arg0: i32, %arg1: i32) -> (i32, i32) {
    %c0_i32 = arith.constant 0 : i32
    %c0_i32_0 = arith.constant 0 : i32
    return %c0_i32, %arg1 : i32, i32
  }
  func.func @transform_4(%arg0: i32, %arg1: i32) -> (i32, i32) {
    %c0_i32 = arith.constant 0 : i32
    return %arg0, %arg1 : i32, i32
  }
}

</mosaic_0001>

<llo_original>
// kernel: tpu_custom_call.1
$region0: #{tpu_custom_call.1}
  #allocation0 [shape = 'u32[]', space=smem, size = 0x4, offset = 0x4, fixed_abs, tag = 'smem constant byte address 0x4 - core index']
  #allocation1 [shape = 'u32[144,128]{1,0:T(1,128)}', space=vmem, size = 0x12000, scoped, tag = 'internal scratch']
  %s0 = inlined_call_operand.hbm [shape: f32[1,144], index: 0, kind: input, shape index: {}]
  %s1 = inlined_call_operand.hbm [shape: bf16[144,1152], index: 1, kind: input, shape index: {}]
  %s2 = inlined_call_operand.hbm [shape: bf16[144,1152], index: 2, kind: input, shape index: {}]
  %s3 = inlined_call_operand.vmem [shape: f32[1,1152], index: 3, kind: input, shape index: {}]
  %s4 = inlined_call_operand.hbm [shape: f32[1,1152], index: 4, kind: output, shape index: {}]
  %s5 = sld [smem:[#allocation0]]
  $region38: #{tpu_custom_call.1} parent=0
    _
  %s7 = ssub.s32 1, %s5
  %s8 = scalar_select 0, %s7, %s5
  $region1: #{tpu_custom_call.1} parent=0
    #allocation2 [shape = 'u8[1024]{0}', space=vmem, size = 0x400, scoped, tag = 'input window, operand 0, single buffered']
    #allocation3 [shape = 's32[1]{0}', space=sflag, size = 0x4, scoped, tag = 'scoped memory for tpu_custom_call.1']
    #allocation4 [shape = 's32[1]{0}', space=sflag, size = 0x4, scoped, tag = 'scoped memory for tpu_custom_call.1']
    #allocation5 [shape = 'u8[331776]{0}', space=vmem, size = 0x51000, scoped, tag = 'input window, operand 1, single buffered']
    #allocation6 [shape = 's32[1]{0}', space=sflag, size = 0x4, scoped, tag = 'scoped memory for tpu_custom_call.1']
    #allocation7 [shape = 'u8[331776]{0}', space=vmem, size = 0x51000, scoped, tag = 'input window, operand 2, single buffered']
    #allocation8 [shape = 'u8[4608]{0}', space=vmem, size = 0x1400, scoped, tag = 'output window, operand 0, single buffered']
    %9 = vsyncpa [#allocation3], 0
    %10 = vsyncpa [#allocation6], 0
    %11 = vsyncpa [#allocation4], 0
    // Predicated region
    $region2: #{tpu_custom_call.1} parent=1 // pred_check
      _
    $region3: #{tpu_custom_call.1} parent=1 // pred_check_branch
      %13 = sbr.rel (0) target = $region5
    $region4: #{tpu_custom_call.1} parent=1 // pred_region
      %s15 = ssub.s32 32, 32
      %16 = vsyncadd [#allocation3], %s15
      %s18 = sshll.u32 [#allocation2], 4
      %s19 = int_to_ptr.vmem [resolvable:$true] %s18
      %21 = dma.hbm_to_vmem [thread:$0]  %s0, 32, %s19, [#allocation3]
    $region5: #{tpu_custom_call.1} parent=1 // pred_fallthru
      _
    // Predicated region
    $region6: #{tpu_custom_call.1} parent=1 // pred_check
      _
    $region7: #{tpu_custom_call.1} parent=1 // pred_check_branch
      %23 = sbr.rel (0) target = $region9
    $region8: #{tpu_custom_call.1} parent=1 // pred_region
      %s25 = ssub.s32 10368, 10368
      %26 = vsyncadd [#allocation6], %s25
      %s27 = sshll.u32 [#allocation5], 4
      %s28 = int_to_ptr.vmem [resolvable:$true] %s27
      %33 = dma.hbm_to_vmem [thread:$0]  %s1, 10368, %s28, [#allocation6], 576, 576, 36
    $region9: #{tpu_custom_call.1} parent=1 // pred_fallthru
      _
    // Predicated region
    $region10: #{tpu_custom_call.1} parent=1 // pred_check
      _
    $region11: #{tpu_custom_call.1} parent=1 // pred_check_branch
      %35 = sbr.rel (0) target = $region13
    $region12: #{tpu_custom_call.1} parent=1 // pred_region
      %s37 = ssub.s32 10368, 10368
      %38 = vsyncadd [#allocation6], %s37
      %s39 = sshll.u32 [#allocation7], 4
      %s40 = int_to_ptr.vmem [resolvable:$true] %s39
      %45 = dma.hbm_to_vmem [thread:$0]  %s2, 10368, %s40, [#allocation6], 576, 576, 36
    $region13: #{tpu_custom_call.1} parent=1 // pred_fallthru
      _
    // Predicated region
    $region14: #{tpu_custom_call.1} parent=1 // pred_check
      _
    $region15: #{tpu_custom_call.1} parent=1 // pred_check_branch
      %47 = sbr.rel (0) target = $region17
    $region16: #{tpu_custom_call.1} parent=1 // pred_region
      _
    $region17: #{tpu_custom_call.1} parent=1 // pred_fallthru
      _
    // Predicated region
    $region18: #{tpu_custom_call.1} parent=1 // pred_check
      _
    $region19: #{tpu_custom_call.1} parent=1 // pred_check_branch
      %49 = sbr.rel (0) target = $region21
    $region20: #{tpu_custom_call.1} parent=1 // pred_region
      %50 = dma.done [#allocation3], 32
    $region21: #{tpu_custom_call.1} parent=1 // pred_fallthru
      _
    // Predicated region
    $region22: #{tpu_custom_call.1} parent=1 // pred_check
      _
    $region23: #{tpu_custom_call.1} parent=1 // pred_check_branch
      %52 = sbr.rel (0) target = $region25
    $region24: #{tpu_custom_call.1} parent=1 // pred_region
      %53 = dma.done [#allocation6], 10368
    $region25: #{tpu_custom_call.1} parent=1 // pred_fallthru
      _
    // Predicated region
    $region26: #{tpu_custom_call.1} parent=1 // pred_check
      _
    $region27: #{tpu_custom_call.1} parent=1 // pred_check_branch
      %55 = sbr.rel (0) target = $region29
    $region28: #{tpu_custom_call.1} parent=1 // pred_region
      %56 = dma.done [#allocation6], 10368
    $region29: #{tpu_custom_call.1} parent=1 // pred_fallthru
      _
    %v58 = vld [vmem:[#allocation2] sm:$0x3]
    %v60 = vlaneseq
    %v61 = vshrl.u32 %v60, 7
    %v62 = vsub.s32 0, %v61
    %v63 = vrot.slane %v58, %v62
    %v64 = vlaneseq
    %v65 = vshrl.u32 %v64, 7
    %v66 = vsub.s32 1, %v65
    %v67 = vrot.slane %v58, %v66
    %v70 = vpack.c.bf16 %v63, %v63
    %v71 = vpack.c.bf16 %v67, %v67
    %v72 = vunpack.c.l.bf16 %v70
    %v73 = vunpack.c.l.bf16 %v71
    %v76 = vcombine.low %v72, %v73
    %v78 = vunpack.c.l.s4 1966171168
    %v79 = vunpack.c.0.s8 %v78
    %v80 = vlaneseq
    %v81 = vshrl.u32 %v80, 7
    %v82 = vsub.s32 %v79, %v81
    %v83 = vrot.slane %v76, %v82
    %v85 = vunpack.c.l.s4 1966171168
    %v86 = vunpack.c.0.s8 %v85
    %v87 = vlaneseq
    %v88 = vshrl.u32 %v87, 7
    %v89 = vsub.s32 %v86, %v88
    %v90 = vrot.slane %v83, %v89
    %v92 = vsub.f32 %v58, %v90
    %v94 = vlaneseq
    %v95 = vshrl.u32 %v94, 7
    %v96 = vsub.s32 0, %v95
    %v97 = vrot.slane %v92, %v96
    %v98 = vlaneseq
    %v99 = vshrl.u32 %v98, 7
    %v100 = vsub.s32 1, %v99
    %v101 = vrot.slane %v92, %v100
    %v104 = vpack.c.bf16 %v97, %v97
    %v105 = vpack.c.bf16 %v101, %v101
    %v106 = vld [vmem:[#allocation5] sm:$0xff]
    %v107 = vld [vmem:[#allocation5 + $0x8] sm:$0xff]
    %v108 = vld [vmem:[#allocation5 + $0x10] sm:$0xff]
    %v109 = vld [vmem:[#allocation5 + $0x18] sm:$0xff]
    %v110 = vld [vmem:[#allocation5 + $0x20] sm:$0xf]
    %v111 = vld [vmem:[#allocation5 + $0x24] sm:$0xff]
    %v112 = vld [vmem:[#allocation5 + $0x2c] sm:$0xff]
    %v113 = vld [vmem:[#allocation5 + $0x34] sm:$0xff]
    %v114 = vld [vmem:[#allocation5 + $0x3c] sm:$0xff]
    %v115 = vld [vmem:[#allocation5 + $0x44] sm:$0xf]
    %v116 = vld [vmem:[#allocation5 + $0x48] sm:$0xff]
    %v117 = vld [vmem:[#allocation5 + $0x50] sm:$0xff]
    %v118 = vld [vmem:[#allocation5 + $0x58] sm:$0xff]
    %v119 = vld [vmem:[#allocation5 + $0x60] sm:$0xff]
    %v120 = vld [vmem:[#allocation5 + $0x68] sm:$0xf]
    %v121 = vld [vmem:[#allocation5 + $0x6c] sm:$0xff]
    %v122 = vld [vmem:[#allocation5 + $0x74] sm:$0xff]
    %v123 = vld [vmem:[#allocation5 + $0x7c] sm:$0xff]
    %v124 = vld [vmem:[#allocation5 + $0x84] sm:$0xff]
    %v125 = vld [vmem:[#allocation5 + $0x8c] sm:$0xf]
    %v126 = vld [vmem:[#allocation5 + $0x90] sm:$0xff]
    %v127 = vld [vmem:[#allocation5 + $0x98] sm:$0xff]
    %v128 = vld [vmem:[#allocation5 + $0xa0] sm:$0xff]
    %v129 = vld [vmem:[#allocation5 + $0xa8] sm:$0xff]
    %v130 = vld [vmem:[#allocation5 + $0xb0] sm:$0xf]
    %v131 = vld [vmem:[#allocation5 + $0xb4] sm:$0xff]
    %v132 = vld [vmem:[#allocation5 + $0xbc] sm:$0xff]
    %v133 = vld [vmem:[#allocation5 + $0xc4] sm:$0xff]
    %v134 = vld [vmem:[#allocation5 + $0xcc] sm:$0xff]
    %v135 = vld [vmem:[#allocation5 + $0xd4] sm:$0xf]
    %v136 = vld [vmem:[#allocation5 + $0xd8] sm:$0xff]
    %v137 = vld [vmem:[#allocation5 + $0xe0] sm:$0xff]
    %v138 = vld [vmem:[#allocation5 + $0xe8] sm:$0xff]
    %v139 = vld [vmem:[#allocation5 + $0xf0] sm:$0xff]
    %v140 = vld [vmem:[#allocation5 + $0xf8] sm:$0xf]
    %v141 = vld [vmem:[#allocation5 + $0xfc] sm:$0xff]
    %v142 = vld [vmem:[#allocation5 + $0x104] sm:$0xff]
    %v143 = vld [vmem:[#allocation5 + $0x10c] sm:$0xff]
    %v144 = vld [vmem:[#allocation5 + $0x114] sm:$0xff]
    %v145 = vld [vmem:[#allocation5 + $0x11c] sm:$0xf]
    %v146 = vld [vmem:[#allocation5 + $0x120] sm:$0xff]
    %v147 = vld [vmem:[#allocation5 + $0x128] sm:$0xff]
    %v148 = vld [vmem:[#allocation5 + $0x130] sm:$0xff]
    %v149 = vld [vmem:[#allocation5 + $0x138] sm:$0xff]
    %v150 = vld [vmem:[#allocation5 + $0x140] sm:$0xf]
    %v151 = vld [vmem:[#allocation5 + $0x144] sm:$0xff]
    %v152 = vld [vmem:[#allocation5 + $0x14c] sm:$0xff]
    %v153 = vld [vmem:[#allocation5 + $0x154] sm:$0xff]
    %v154 = vld [vmem:[#allocation5 + $0x15c] sm:$0xff]
    %v155 = vld [vmem:[#allocation5 + $0x164] sm:$0xf]
    %v156 = vld [vmem:[#allocation5 + $0x168] sm:$0xff]
    %v157 = vld [vmem:[#allocation5 + $0x170] sm:$0xff]
    %v158 = vld [vmem:[#allocation5 + $0x178] sm:$0xff]
    %v159 = vld [vmem:[#allocation5 + $0x180] sm:$0xff]
    %v160 = vld [vmem:[#allocation5 + $0x188] sm:$0xf]
    %v161 = vld [vmem:[#allocation5 + $0x18c] sm:$0xff]
    %v162 = vld [vmem:[#allocation5 + $0x194] sm:$0xff]
    %v163 = vld [vmem:[#allocation5 + $0x19c] sm:$0xff]
    %v164 = vld [vmem:[#allocation5 + $0x1a4] sm:$0xff]
    %v165 = vld [vmem:[#allocation5 + $0x1ac] sm:$0xf]
    %v166 = vld [vmem:[#allocation5 + $0x1b0] sm:$0xff]
    %v167 = vld [vmem:[#allocation5 + $0x1b8] sm:$0xff]
    %v168 = vld [vmem:[#allocation5 + $0x1c0] sm:$0xff]
    %v169 = vld [vmem:[#allocation5 + $0x1c8] sm:$0xff]
    %v170 = vld [vmem:[#allocation5 + $0x1d0] sm:$0xf]
    %v171 = vld [vmem:[#allocation5 + $0x1d4] sm:$0xff]
    %v172 = vld [vmem:[#allocation5 + $0x1dc] sm:$0xff]
    %v173 = vld [vmem:[#allocation5 + $0x1e4] sm:$0xff]
    %v174 = vld [vmem:[#allocation5 + $0x1ec] sm:$0xff]
    %v175 = vld [vmem:[#allocation5 + $0x1f4] sm:$0xf]
    %v176 = vld [vmem:[#allocation5 + $0x1f8] sm:$0xff]
    %v177 = vld [vmem:[#allocation5 + $0x200] sm:$0xff]
    %v178 = vld [vmem:[#allocation5 + $0x208] sm:$0xff]
    %v179 = vld [vmem:[#allocation5 + $0x210] sm:$0xff]
    %v180 = vld [vmem:[#allocation5 + $0x218] sm:$0xf]
    %v181 = vld [vmem:[#allocation5 + $0x21c] sm:$0xff]
    %v182 = vld [vmem:[#allocation5 + $0x224] sm:$0xff]
    %v183 = vld [vmem:[#allocation5 + $0x22c] sm:$0xff]
    %v184 = vld [vmem:[#allocation5 + $0x234] sm:$0xff]
    %v185 = vld [vmem:[#allocation5 + $0x23c] sm:$0xf]
    %v186 = vld [vmem:[#allocation5 + $0x240] sm:$0xff]
    %v187 = vld [vmem:[#allocation5 + $0x248] sm:$0xff]
    %v188 = vld [vmem:[#allocation5 + $0x250] sm:$0xff]
    %v189 = vld [vmem:[#allocation5 + $0x258] sm:$0xff]
    %v190 = vld [vmem:[#allocation5 + $0x260] sm:$0xf]
    %v191 = vld [vmem:[#allocation5 + $0x264] sm:$0xff]
    %v192 = vld [vmem:[#allocation5 + $0x26c] sm:$0xff]
    %v193 = vld [vmem:[#allocation5 + $0x274] sm:$0xff]
    %v194 = vld [vmem:[#allocation5 + $0x27c] sm:$0xff]
    %v195 = vld [vmem:[#allocation5 + $0x284] sm:$0xf]
    %v196 = vld [vmem:[#allocation7] sm:$0xff]
    %v197 = vld [vmem:[#allocation7 + $0x8] sm:$0xff]
    %v198 = vld [vmem:[#allocation7 + $0x10] sm:$0xff]
    %v199 = vld [vmem:[#allocation7 + $0x18] sm:$0xff]
    %v200 = vld [vmem:[#allocation7 + $0x20] sm:$0xf]
    %v201 = vld [vmem:[#allocation7 + $0x24] sm:$0xff]
    %v202 = vld [vmem:[#allocation7 + $0x2c] sm:$0xff]
    %v203 = vld [vmem:[#allocation7 + $0x34] sm:$0xff]
    %v204 = vld [vmem:[#allocation7 + $0x3c] sm:$0xff]
    %v205 = vld [vmem:[#allocation7 + $0x44] sm:$0xf]
    %v206 = vld [vmem:[#allocation7 + $0x48] sm:$0xff]
    %v207 = vld [vmem:[#allocation7 + $0x50] sm:$0xff]
    %v208 = vld [vmem:[#allocation7 + $0x58] sm:$0xff]
    %v209 = vld [vmem:[#allocation7 + $0x60] sm:$0xff]
    %v210 = vld [vmem:[#allocation7 + $0x68] sm:$0xf]
    %v211 = vld [vmem:[#allocation7 + $0x6c] sm:$0xff]
    %v212 = vld [vmem:[#allocation7 + $0x74] sm:$0xff]
    %v213 = vld [vmem:[#allocation7 + $0x7c] sm:$0xff]
    %v214 = vld [vmem:[#allocation7 + $0x84] sm:$0xff]
    %v215 = vld [vmem:[#allocation7 + $0x8c] sm:$0xf]
    %v216 = vld [vmem:[#allocation7 + $0x90] sm:$0xff]
    %v217 = vld [vmem:[#allocation7 + $0x98] sm:$0xff]
    %v218 = vld [vmem:[#allocation7 + $0xa0] sm:$0xff]
    %v219 = vld [vmem:[#allocation7 + $0xa8] sm:$0xff]
    %v220 = vld [vmem:[#allocation7 + $0xb0] sm:$0xf]
    %v221 = vld [vmem:[#allocation7 + $0xb4] sm:$0xff]
    %v222 = vld [vmem:[#allocation7 + $0xbc] sm:$0xff]
    %v223 = vld [vmem:[#allocation7 + $0xc4] sm:$0xff]
    %v224 = vld [vmem:[#allocation7 + $0xcc] sm:$0xff]
    %v225 = vld [vmem:[#allocation7 + $0xd4] sm:$0xf]
    %v226 = vld [vmem:[#allocation7 + $0xd8] sm:$0xff]
    %v227 = vld [vmem:[#allocation7 + $0xe0] sm:$0xff]
    %v228 = vld [vmem:[#allocation7 + $0xe8] sm:$0xff]
    %v229 = vld [vmem:[#allocation7 + $0xf0] sm:$0xff]
    %v230 = vld [vmem:[#allocation7 + $0xf8] sm:$0xf]
    %v231 = vld [vmem:[#allocation7 + $0xfc] sm:$0xff]
    %v232 = vld [vmem:[#allocation7 + $0x104] sm:$0xff]
    %v233 = vld [vmem:[#allocation7 + $0x10c] sm:$0xff]
    %v234 = vld [vmem:[#allocation7 + $0x114] sm:$0xff]
    %v235 = vld [vmem:[#allocation7 + $0x11c] sm:$0xf]
    %v236 = vld [vmem:[#allocation7 + $0x120] sm:$0xff]
    %v237 = vld [vmem:[#allocation7 + $0x128] sm:$0xff]
    %v238 = vld [vmem:[#allocation7 + $0x130] sm:$0xff]
    %v239 = vld [vmem:[#allocation7 + $0x138] sm:$0xff]
    %v240 = vld [vmem:[#allocation7 + $0x140] sm:$0xf]
    %v241 = vld [vmem:[#allocation7 + $0x144] sm:$0xff]
    %v242 = vld [vmem:[#allocation7 + $0x14c] sm:$0xff]
    %v243 = vld [vmem:[#allocation7 + $0x154] sm:$0xff]
    %v244 = vld [vmem:[#allocation7 + $0x15c] sm:$0xff]
    %v245 = vld [vmem:[#allocation7 + $0x164] sm:$0xf]
    %v246 = vld [vmem:[#allocation7 + $0x168] sm:$0xff]
    %v247 = vld [vmem:[#allocation7 + $0x170] sm:$0xff]
    %v248 = vld [vmem:[#allocation7 + $0x178] sm:$0xff]
    %v249 = vld [vmem:[#allocation7 + $0x180] sm:$0xff]
    %v250 = vld [vmem:[#allocation7 + $0x188] sm:$0xf]
    %v251 = vld [vmem:[#allocation7 + $0x18c] sm:$0xff]
    %v252 = vld [vmem:[#allocation7 + $0x194] sm:$0xff]
    %v253 = vld [vmem:[#allocation7 + $0x19c] sm:$0xff]
    %v254 = vld [vmem:[#allocation7 + $0x1a4] sm:$0xff]
    %v255 = vld [vmem:[#allocation7 + $0x1ac] sm:$0xf]
    %v256 = vld [vmem:[#allocation7 + $0x1b0] sm:$0xff]
    %v257 = vld [vmem:[#allocation7 + $0x1b8] sm:$0xff]
    %v258 = vld [vmem:[#allocation7 + $0x1c0] sm:$0xff]
    %v259 = vld [vmem:[#allocation7 + $0x1c8] sm:$0xff]
    %v260 = vld [vmem:[#allocation7 + $0x1d0] sm:$0xf]
    %v261 = vld [vmem:[#allocation7 + $0x1d4] sm:$0xff]
    %v262 = vld [vmem:[#allocation7 + $0x1dc] sm:$0xff]
    %v263 = vld [vmem:[#allocation7 + $0x1e4] sm:$0xff]
    %v264 = vld [vmem:[#allocation7 + $0x1ec] sm:$0xff]
    %v265 = vld [vmem:[#allocation7 + $0x1f4] sm:$0xf]
    %v266 = vld [vmem:[#allocation7 + $0x1f8] sm:$0xff]
    %v267 = vld [vmem:[#allocation7 + $0x200] sm:$0xff]
    %v268 = vld [vmem:[#allocation7 + $0x208] sm:$0xff]
    %v269 = vld [vmem:[#allocation7 + $0x210] sm:$0xff]
    %v270 = vld [vmem:[#allocation7 + $0x218] sm:$0xf]
    %v271 = vld [vmem:[#allocation7 + $0x21c] sm:$0xff]
    %v272 = vld [vmem:[#allocation7 + $0x224] sm:$0xff]
    %v273 = vld [vmem:[#allocation7 + $0x22c] sm:$0xff]
    %v274 = vld [vmem:[#allocation7 + $0x234] sm:$0xff]
    %v275 = vld [vmem:[#allocation7 + $0x23c] sm:$0xf]
    %v276 = vld [vmem:[#allocation7 + $0x240] sm:$0xff]
    %v277 = vld [vmem:[#allocation7 + $0x248] sm:$0xff]
    %v278 = vld [vmem:[#allocation7 + $0x250] sm:$0xff]
    %v279 = vld [vmem:[#allocation7 + $0x258] sm:$0xff]
    %v280 = vld [vmem:[#allocation7 + $0x260] sm:$0xf]
    %v281 = vld [vmem:[#allocation7 + $0x264] sm:$0xff]
    %v282 = vld [vmem:[#allocation7 + $0x26c] sm:$0xff]
    %v283 = vld [vmem:[#allocation7 + $0x274] sm:$0xff]
    %v284 = vld [vmem:[#allocation7 + $0x27c] sm:$0xff]
    %v285 = vld [vmem:[#allocation7 + $0x284] sm:$0xf]
    %v376 = vunpack.c.l.b16 %v106
    %v377 = vunpack.c.h.b16 %v106
    %v378 = vunpack.c.l.b16 %v107
    %v379 = vunpack.c.h.b16 %v107
    %v380 = vunpack.c.l.b16 %v108
    %v381 = vunpack.c.h.b16 %v108
    %v382 = vunpack.c.l.b16 %v109
    %v383 = vunpack.c.h.b16 %v109
    %v384 = vunpack.c.l.b16 %v110
    %v385 = vunpack.c.l.b16 %v111
    %v386 = vunpack.c.h.b16 %v111
    %v387 = vunpack.c.l.b16 %v112
    %v388 = vunpack.c.h.b16 %v112
    %v389 = vunpack.c.l.b16 %v113
    %v390 = vunpack.c.h.b16 %v113
    %v391 = vunpack.c.l.b16 %v114
    %v392 = vunpack.c.h.b16 %v114
    %v393 = vunpack.c.l.b16 %v115
    %v394 = vunpack.c.l.b16 %v116
    %v395 = vunpack.c.h.b16 %v116
    %v396 = vunpack.c.l.b16 %v117
    %v397 = vunpack.c.h.b16 %v117
    %v398 = vunpack.c.l.b16 %v118
    %v399 = vunpack.c.h.b16 %v118
    %v400 = vunpack.c.l.b16 %v119
    %v401 = vunpack.c.h.b16 %v119
    %v402 = vunpack.c.l.b16 %v120
    %v403 = vunpack.c.l.b16 %v121
    %v404 = vunpack.c.h.b16 %v121
    %v405 = vunpack.c.l.b16 %v122
    %v406 = vunpack.c.h.b16 %v122
    %v407 = vunpack.c.l.b16 %v123
    %v408 = vunpack.c.h.b16 %v123
    %v409 = vunpack.c.l.b16 %v124
    %v410 = vunpack.c.h.b16 %v124
    %v411 = vunpack.c.l.b16 %v125
    %v412 = vunpack.c.l.b16 %v126
    %v413 = vunpack.c.h.b16 %v126
    %v414 = vunpack.c.l.b16 %v127
    %v415 = vunpack.c.h.b16 %v127
    %v416 = vunpack.c.l.b16 %v128
    %v417 = vunpack.c.h.b16 %v128
    %v418 = vunpack.c.l.b16 %v129
    %v419 = vunpack.c.h.b16 %v129
    %v420 = vunpack.c.l.b16 %v130
    %v421 = vunpack.c.l.b16 %v131
    %v422 = vunpack.c.h.b16 %v131
    %v423 = vunpack.c.l.b16 %v132
    %v424 = vunpack.c.h.b16 %v132
    %v425 = vunpack.c.l.b16 %v133
    %v426 = vunpack.c.h.b16 %v133
    %v427 = vunpack.c.l.b16 %v134
    %v428 = vunpack.c.h.b16 %v134
    %v429 = vunpack.c.l.b16 %v135
    %v430 = vunpack.c.l.b16 %v136
    %v431 = vunpack.c.h.b16 %v136
    %v432 = vunpack.c.l.b16 %v137
    %v433 = vunpack.c.h.b16 %v137
    %v434 = vunpack.c.l.b16 %v138
    %v435 = vunpack.c.h.b16 %v138
    %v436 = vunpack.c.l.b16 %v139
    %v437 = vunpack.c.h.b16 %v139
    %v438 = vunpack.c.l.b16 %v140
    %v439 = vunpack.c.l.b16 %v141
    %v440 = vunpack.c.h.b16 %v141
    %v441 = vunpack.c.l.b16 %v142
    %v442 = vunpack.c.h.b16 %v142
    %v443 = vunpack.c.l.b16 %v143
    %v444 = vunpack.c.h.b16 %v143
    %v445 = vunpack.c.l.b16 %v144
    %v446 = vunpack.c.h.b16 %v144
    %v447 = vunpack.c.l.b16 %v145
    %v448 = vunpack.c.l.b16 %v146
    %v449 = vunpack.c.h.b16 %v146
    %v450 = vunpack.c.l.b16 %v147
    %v451 = vunpack.c.h.b16 %v147
    %v452 = vunpack.c.l.b16 %v148
    %v453 = vunpack.c.h.b16 %v148
    %v454 = vunpack.c.l.b16 %v149
    %v455 = vunpack.c.h.b16 %v149
    %v456 = vunpack.c.l.b16 %v150
    %v457 = vunpack.c.l.b16 %v151
    %v458 = vunpack.c.h.b16 %v151
    %v459 = vunpack.c.l.b16 %v152
    %v460 = vunpack.c.h.b16 %v152
    %v461 = vunpack.c.l.b16 %v153
    %v462 = vunpack.c.h.b16 %v153
    %v463 = vunpack.c.l.b16 %v154
    %v464 = vunpack.c.h.b16 %v154
    %v465 = vunpack.c.l.b16 %v155
    %v466 = vunpack.c.l.b16 %v156
    %v467 = vunpack.c.h.b16 %v156
    %v468 = vunpack.c.l.b16 %v157
    %v469 = vunpack.c.h.b16 %v157
    %v470 = vunpack.c.l.b16 %v158
    %v471 = vunpack.c.h.b16 %v158
    %v472 = vunpack.c.l.b16 %v159
    %v473 = vunpack.c.h.b16 %v159
    %v474 = vunpack.c.l.b16 %v160
    %v475 = vunpack.c.l.b16 %v161
    %v476 = vunpack.c.h.b16 %v161
    %v477 = vunpack.c.l.b16 %v162
    %v478 = vunpack.c.h.b16 %v162
    %v479 = vunpack.c.l.b16 %v163
    %v480 = vunpack.c.h.b16 %v163
    %v481 = vunpack.c.l.b16 %v164
    %v482 = vunpack.c.h.b16 %v164
    %v483 = vunpack.c.l.b16 %v165
    %v484 = vunpack.c.l.b16 %v166
    %v485 = vunpack.c.h.b16 %v166
    %v486 = vunpack.c.l.b16 %v167
    %v487 = vunpack.c.h.b16 %v167
    %v488 = vunpack.c.l.b16 %v168
    %v489 = vunpack.c.h.b16 %v168
    %v490 = vunpack.c.l.b16 %v169
    %v491 = vunpack.c.h.b16 %v169
    %v492 = vunpack.c.l.b16 %v170
    %v493 = vunpack.c.l.b16 %v171
    %v494 = vunpack.c.h.b16 %v171
    %v495 = vunpack.c.l.b16 %v172
    %v496 = vunpack.c.h.b16 %v172
    %v497 = vunpack.c.l.b16 %v173
    %v498 = vunpack.c.h.b16 %v173
    %v499 = vunpack.c.l.b16 %v174
    %v500 = vunpack.c.h.b16 %v174
    %v501 = vunpack.c.l.b16 %v175
    %v502 = vunpack.c.l.b16 %v176
    %v503 = vunpack.c.h.b16 %v176
    %v504 = vunpack.c.l.b16 %v177
    %v505 = vunpack.c.h.b16 %v177
    %v506 = vunpack.c.l.b16 %v178
    %v507 = vunpack.c.h.b16 %v178
    %v508 = vunpack.c.l.b16 %v179
    %v509 = vunpack.c.h.b16 %v179
    %v510 = vunpack.c.l.b16 %v180
    %v511 = vunpack.c.l.b16 %v181
    %v512 = vunpack.c.h.b16 %v181
    %v513 = vunpack.c.l.b16 %v182
    %v514 = vunpack.c.h.b16 %v182
    %v515 = vunpack.c.l.b16 %v183
    %v516 = vunpack.c.h.b16 %v183
    %v517 = vunpack.c.l.b16 %v184
    %v518 = vunpack.c.h.b16 %v184
    %v519 = vunpack.c.l.b16 %v185
    %v520 = vunpack.c.l.b16 %v186
    %v521 = vunpack.c.h.b16 %v186
    %v522 = vunpack.c.l.b16 %v187
    %v523 = vunpack.c.h.b16 %v187
    %v524 = vunpack.c.l.b16 %v188
    %v525 = vunpack.c.h.b16 %v188
    %v526 = vunpack.c.l.b16 %v189
    %v527 = vunpack.c.h.b16 %v189
    %v528 = vunpack.c.l.b16 %v190
    %v529 = vunpack.c.l.b16 %v191
    %v530 = vunpack.c.h.b16 %v191
    %v531 = vunpack.c.l.b16 %v192
    %v532 = vunpack.c.h.b16 %v192
    %v533 = vunpack.c.l.b16 %v193
    %v534 = vunpack.c.h.b16 %v193
    %v535 = vunpack.c.l.b16 %v194
    %v536 = vunpack.c.h.b16 %v194
    %v537 = vunpack.c.l.b16 %v195
    %v538 = vpack.c.b16 %v385, %v376
    %v539 = vpack.c.b16 %v386, %v377
    %v540 = vpack.c.b16 %v387, %v378
    %v541 = vpack.c.b16 %v388, %v379
    %v542 = vpack.c.b16 %v389, %v380
    %v543 = vpack.c.b16 %v390, %v381
    %v544 = vpack.c.b16 %v391, %v382
    %v545 = vpack.c.b16 %v392, %v383
    %v546 = vpack.c.b16 %v393, %v384
    %v547 = vpack.c.b16 %v403, %v394
    %v548 = vpack.c.b16 %v404, %v395
    %v549 = vpack.c.b16 %v405, %v396
    %v550 = vpack.c.b16 %v406, %v397
    %v551 = vpack.c.b16 %v407, %v398
    %v552 = vpack.c.b16 %v408, %v399
    %v553 = vpack.c.b16 %v409, %v400
    %v554 = vpack.c.b16 %v410, %v401
    %v555 = vpack.c.b16 %v411, %v402
    %v556 = vpack.c.b16 %v421, %v412
    %v557 = vpack.c.b16 %v422, %v413
    %v558 = vpack.c.b16 %v423, %v414
    %v559 = vpack.c.b16 %v424, %v415
    %v560 = vpack.c.b16 %v425, %v416
    %v561 = vpack.c.b16 %v426, %v417
    %v562 = vpack.c.b16 %v427, %v418
    %v563 = vpack.c.b16 %v428, %v419
    %v564 = vpack.c.b16 %v429, %v420
    %v565 = vpack.c.b16 %v439, %v430
    %v566 = vpack.c.b16 %v440, %v431
    %v567 = vpack.c.b16 %v441, %v432
    %v568 = vpack.c.b16 %v442, %v433
    %v569 = vpack.c.b16 %v443, %v434
    %v570 = vpack.c.b16 %v444, %v435
    %v571 = vpack.c.b16 %v445, %v436
    %v572 = vpack.c.b16 %v446, %v437
    %v573 = vpack.c.b16 %v447, %v438
    %v574 = vpack.c.b16 %v457, %v448
    %v575 = vpack.c.b16 %v458, %v449
    %v576 = vpack.c.b16 %v459, %v450
    %v577 = vpack.c.b16 %v460, %v451
    %v578 = vpack.c.b16 %v461, %v452
    %v579 = vpack.c.b16 %v462, %v453
    %v580 = vpack.c.b16 %v463, %v454
    %v581 = vpack.c.b16 %v464, %v455
    %v582 = vpack.c.b16 %v465, %v456
    %v583 = vpack.c.b16 %v475, %v466
    %v584 = vpack.c.b16 %v476, %v467
    %v585 = vpack.c.b16 %v477, %v468
    %v586 = vpack.c.b16 %v478, %v469
    %v587 = vpack.c.b16 %v479, %v470
    %v588 = vpack.c.b16 %v480, %v471
    %v589 = vpack.c.b16 %v481, %v472
    %v590 = vpack.c.b16 %v482, %v473
    %v591 = vpack.c.b16 %v483, %v474
    %v592 = vpack.c.b16 %v493, %v484
    %v593 = vpack.c.b16 %v494, %v485
    %v594 = vpack.c.b16 %v495, %v486
    %v595 = vpack.c.b16 %v496, %v487
    %v596 = vpack.c.b16 %v497, %v488
    %v597 = vpack.c.b16 %v498, %v489
    %v598 = vpack.c.b16 %v499, %v490
    %v599 = vpack.c.b16 %v500, %v491
    %v600 = vpack.c.b16 %v501, %v492
    %v601 = vpack.c.b16 %v511, %v502
    %v602 = vpack.c.b16 %v512, %v503
    %v603 = vpack.c.b16 %v513, %v504
    %v604 = vpack.c.b16 %v514, %v505
    %v605 = vpack.c.b16 %v515, %v506
    %v606 = vpack.c.b16 %v516, %v507
    %v607 = vpack.c.b16 %v517, %v508
    %v608 = vpack.c.b16 %v518, %v509
    %v609 = vpack.c.b16 %v519, %v510
    %v610 = vpack.c.b16 %v529, %v520
    %v611 = vpack.c.b16 %v530, %v521
    %v612 = vpack.c.b16 %v531, %v522
    %v613 = vpack.c.b16 %v532, %v523
    %v614 = vpack.c.b16 %v533, %v524
    %v615 = vpack.c.b16 %v534, %v525
    %v616 = vpack.c.b16 %v535, %v526
    %v617 = vpack.c.b16 %v536, %v527
    %v618 = vpack.c.b16 %v537, %v528
    %vm700 = vcmask 130048
    %v702 = vsel %vm700, %v105, 0
    %704 = vmatprep.subr.bf16.mxu0 %v539
    %705 = vmatpush1.bf16.msra.mxu0 %v538
    %706 = vmatprep.subr.bf16.mxu0 %v548
    %707 = vmatpush1.bf16.msra.mxu0 %v547
    %708 = vmatprep.subr.bf16.mxu0 %v557
    %709 = vmatpush1.bf16.msra.mxu0 %v556
    %710 = vmatprep.subr.bf16.mxu0 %v566
    %711 = vmatpush1.bf16.msra.mxu0 %v565
    %712 = vmatprep.subr.bf16.mxu0 %v575
    %713 = vmatpush1.bf16.msra.mxu0 %v574
    %714 = vmatprep.subr.bf16.mxu0 %v584
    %715 = vmatpush1.bf16.msra.mxu0 %v583
    %716 = vmatprep.subr.bf16.mxu0 %v593
    %717 = vmatpush1.bf16.msra.mxu0 %v592
    %718 = vmatprep.subr.bf16.mxu0 %v602
    %719 = vmatpush1.bf16.msra.mxu0 %v601
    %720 = vmatprep.subr.bf16.mxu0 %v611
    %721 = vmatpush1.bf16.msra.mxu0 %v610
    %722 = vmatprep.subr.bf16.mxu0 0
    %723 = vmatpush1.bf16.msra.mxu0 0
    %724 = vmatprep.subr.bf16.mxu0 0
    %725 = vmatpush1.bf16.msra.mxu0 0
    %726 = vmatprep.subr.bf16.mxu0 0
    %727 = vmatpush1.bf16.msra.mxu0 0
    %728 = vmatprep.subr.bf16.mxu0 0
    %729 = vmatpush1.bf16.msra.mxu0 0
    %730 = vmatprep.subr.bf16.mxu0 0
    %731 = vmatpush1.bf16.msra.mxu0 0
    %732 = vmatprep.subr.bf16.mxu0 0
    %733 = vmatpush1.bf16.msra.mxu0 0
    %734 = vmatprep.subr.bf16.mxu0 0
    %735 = vmatpush1.bf16.msra.mxu0 0
    %736 = vmatprep.mubr.bf16.mxu0 %v702
    %737 = vmatmul.mubr.bf16.gmra.mrb[0].mxu0 %v104
    %v738 = vpop.f32.mrb[0].mxu0
    %v739 = vadd.f32 0.0, %v738
    %v740 = vpop.f32.mrb[0].mxu0
    %v741 = vadd.f32 0.0, %v740
    %v742 = vpop.f32.mrb[0].mxu0
    %v743 = vpop.f32.mrb[0].mxu0
    %744 = vdwg.mxu0
    %745 = vmatprep.subr.bf16.mxu0 %v541
    %746 = vmatpush1.bf16.msra.mxu0 %v540
    %747 = vmatprep.subr.bf16.mxu0 %v550
    %748 = vmatpush1.bf16.msra.mxu0 %v549
    %749 = vmatprep.subr.bf16.mxu0 %v559
    %750 = vmatpush1.bf16.msra.mxu0 %v558
    %751 = vmatprep.subr.bf16.mxu0 %v568
    %752 = vmatpush1.bf16.msra.mxu0 %v567
    %753 = vmatprep.subr.bf16.mxu0 %v577
    %754 = vmatpush1.bf16.msra.mxu0 %v576
    %755 = vmatprep.subr.bf16.mxu0 %v586
    %756 = vmatpush1.bf16.msra.mxu0 %v585
    %757 = vmatprep.subr.bf16.mxu0 %v595
    %758 = vmatpush1.bf16.msra.mxu0 %v594
    %759 = vmatprep.subr.bf16.mxu0 %v604
    %760 = vmatpush1.bf16.msra.mxu0 %v603
    %761 = vmatprep.subr.bf16.mxu0 %v613
    %762 = vmatpush1.bf16.msra.mxu0 %v612
    %763 = vmatprep.subr.bf16.mxu0 0
    %764 = vmatpush1.bf16.msra.mxu0 0
    %765 = vmatprep.subr.bf16.mxu0 0
    %766 = vmatpush1.bf16.msra.mxu0 0
    %767 = vmatprep.subr.bf16.mxu0 0
    %768 = vmatpush1.bf16.msra.mxu0 0
    %769 = vmatprep.subr.bf16.mxu0 0
    %770 = vmatpush1.bf16.msra.mxu0 0
    %771 = vmatprep.subr.bf16.mxu0 0
    %772 = vmatpush1.bf16.msra.mxu0 0
    %773 = vmatprep.subr.bf16.mxu0 0
    %774 = vmatpush1.bf16.msra.mxu0 0
    %775 = vmatprep.subr.bf16.mxu0 0
    %776 = vmatpush1.bf16.msra.mxu0 0
    %777 = vmatprep.mubr.bf16.mxu0 %v702
    %778 = vmatmul.mubr.bf16.gmra.mrb[0].mxu0 %v104
    %v779 = vpop.f32.mrb[0].mxu0
    %v780 = vadd.f32 0.0, %v779
    %v781 = vpop.f32.mrb[0].mxu0
    %v782 = vadd.f32 0.0, %v781
    %v783 = vpop.f32.mrb[0].mxu0
    %v784 = vpop.f32.mrb[0].mxu0
    %785 = vdwg.mxu0
    %786 = vmatprep.subr.bf16.mxu0 %v543
    %787 = vmatpush1.bf16.msra.mxu0 %v542
    %788 = vmatprep.subr.bf16.mxu0 %v552
    %789 = vmatpush1.bf16.msra.mxu0 %v551
    %790 = vmatprep.subr.bf16.mxu0 %v561
    %791 = vmatpush1.bf16.msra.mxu0 %v560
    %792 = vmatprep.subr.bf16.mxu0 %v570
    %793 = vmatpush1.bf16.msra.mxu0 %v569
    %794 = vmatprep.subr.bf16.mxu0 %v579
    %795 = vmatpush1.bf16.msra.mxu0 %v578
    %796 = vmatprep.subr.bf16.mxu0 %v588
    %797 = vmatpush1.bf16.msra.mxu0 %v587
    %798 = vmatprep.subr.bf16.mxu0 %v597
    %799 = vmatpush1.bf16.msra.mxu0 %v596
    %800 = vmatprep.subr.bf16.mxu0 %v606
    %801 = vmatpush1.bf16.msra.mxu0 %v605
    %802 = vmatprep.subr.bf16.mxu0 %v615
    %803 = vmatpush1.bf16.msra.mxu0 %v614
    %804 = vmatprep.subr.bf16.mxu0 0
    %805 = vmatpush1.bf16.msra.mxu0 0
    %806 = vmatprep.subr.bf16.mxu0 0
    %807 = vmatpush1.bf16.msra.mxu0 0
    %808 = vmatprep.subr.bf16.mxu0 0
    %809 = vmatpush1.bf16.msra.mxu0 0
    %810 = vmatprep.subr.bf16.mxu0 0
    %811 = vmatpush1.bf16.msra.mxu0 0
    %812 = vmatprep.subr.bf16.mxu0 0
    %813 = vmatpush1.bf16.msra.mxu0 0
    %814 = vmatprep.subr.bf16.mxu0 0
    %815 = vmatpush1.bf16.msra.mxu0 0
    %816 = vmatprep.subr.bf16.mxu0 0
    %817 = vmatpush1.bf16.msra.mxu0 0
    %818 = vmatprep.mubr.bf16.mxu0 %v702
    %819 = vmatmul.mubr.bf16.gmra.mrb[0].mxu0 %v104
    %v820 = vpop.f32.mrb[0].mxu0
    %v821 = vadd.f32 0.0, %v820
    %v822 = vpop.f32.mrb[0].mxu0
    %v823 = vadd.f32 0.0, %v822
    %v824 = vpop.f32.mrb[0].mxu0
    %v825 = vpop.f32.mrb[0].mxu0
    %826 = vdwg.mxu0
    %827 = vmatprep.subr.bf16.mxu0 %v545
    %828 = vmatpush1.bf16.msra.mxu0 %v544
    %829 = vmatprep.subr.bf16.mxu0 %v554
    %830 = vmatpush1.bf16.msra.mxu0 %v553
    %831 = vmatprep.subr.bf16.mxu0 %v563
    %832 = vmatpush1.bf16.msra.mxu0 %v562
    %833 = vmatprep.subr.bf16.mxu0 %v572
    %834 = vmatpush1.bf16.msra.mxu0 %v571
    %835 = vmatprep.subr.bf16.mxu0 %v581
    %836 = vmatpush1.bf16.msra.mxu0 %v580
    %837 = vmatprep.subr.bf16.mxu0 %v590
    %838 = vmatpush1.bf16.msra.mxu0 %v589
    %839 = vmatprep.subr.bf16.mxu0 %v599
    %840 = vmatpush1.bf16.msra.mxu0 %v598
    %841 = vmatprep.subr.bf16.mxu0 %v608
    %842 = vmatpush1.bf16.msra.mxu0 %v607
    %843 = vmatprep.subr.bf16.mxu0 %v617
    %844 = vmatpush1.bf16.msra.mxu0 %v616
    %845 = vmatprep.subr.bf16.mxu0 0
    %846 = vmatpush1.bf16.msra.mxu0 0
    %847 = vmatprep.subr.bf16.mxu0 0
    %848 = vmatpush1.bf16.msra.mxu0 0
    %849 = vmatprep.subr.bf16.mxu0 0
    %850 = vmatpush1.bf16.msra.mxu0 0
    %851 = vmatprep.subr.bf16.mxu0 0
    %852 = vmatpush1.bf16.msra.mxu0 0
    %853 = vmatprep.subr.bf16.mxu0 0
    %854 = vmatpush1.bf16.msra.mxu0 0
    %855 = vmatprep.subr.bf16.mxu0 0
    %856 = vmatpush1.bf16.msra.mxu0 0
    %857 = vmatprep.subr.bf16.mxu0 0
    %858 = vmatpush1.bf16.msra.mxu0 0
    %859 = vmatprep.mubr.bf16.mxu0 %v702
    %860 = vmatmul.mubr.bf16.gmra.mrb[0].mxu0 %v104
    %v861 = vpop.f32.mrb[0].mxu0
    %v862 = vadd.f32 0.0, %v861
    %v863 = vpop.f32.mrb[0].mxu0
    %v864 = vadd.f32 0.0, %v863
    %v865 = vpop.f32.mrb[0].mxu0
    %v866 = vpop.f32.mrb[0].mxu0
    %867 = vdwg.mxu0
    %868 = vmatprep.subr.bf16.mxu0 0
    %869 = vmatpush1.bf16.msra.mxu0 %v546
    %870 = vmatprep.subr.bf16.mxu0 0
    %871 = vmatpush1.bf16.msra.mxu0 %v555
    %872 = vmatprep.subr.bf16.mxu0 0
    %873 = vmatpush1.bf16.msra.mxu0 %v564
    %874 = vmatprep.subr.bf16.mxu0 0
    %875 = vmatpush1.bf16.msra.mxu0 %v573
    %876 = vmatprep.subr.bf16.mxu0 0
    %877 = vmatpush1.bf16.msra.mxu0 %v582
    %878 = vmatprep.subr.bf16.mxu0 0
    %879 = vmatpush1.bf16.msra.mxu0 %v591
    %880 = vmatprep.subr.bf16.mxu0 0
    %881 = vmatpush1.bf16.msra.mxu0 %v600
    %882 = vmatprep.subr.bf16.mxu0 0
    %883 = vmatpush1.bf16.msra.mxu0 %v609
    %884 = vmatprep.subr.bf16.mxu0 0
    %885 = vmatpush1.bf16.msra.mxu0 %v618
    %886 = vmatprep.subr.bf16.mxu0 0
    %887 = vmatpush1.bf16.msra.mxu0 0
    %888 = vmatprep.subr.bf16.mxu0 0
    %889 = vmatpush1.bf16.msra.mxu0 0
    %890 = vmatprep.subr.bf16.mxu0 0
    %891 = vmatpush1.bf16.msra.mxu0 0
    %892 = vmatprep.subr.bf16.mxu0 0
    %893 = vmatpush1.bf16.msra.mxu0 0
    %894 = vmatprep.subr.bf16.mxu0 0
    %895 = vmatpush1.bf16.msra.mxu0 0
    %896 = vmatprep.subr.bf16.mxu0 0
    %897 = vmatpush1.bf16.msra.mxu0 0
    %898 = vmatprep.subr.bf16.mxu0 0
    %899 = vmatpush1.bf16.msra.mxu0 0
    %900 = vmatprep.mubr.bf16.mxu0 %v702
    %901 = vmatmul.mubr.bf16.gmra.mrb[0].mxu0 %v104
    %v902 = vpop.f32.mrb[0].mxu0
    %v903 = vadd.f32 0.0, %v902
    %v904 = vpop.f32.mrb[0].mxu0
    %v905 = vpop.f32.mrb[0].mxu0
    %v906 = vpop.f32.mrb[0].mxu0
    %907 = vdwg.mxu0
    %v909 = vsel %vm700, %v71, 0
    %911 = vmatprep.subr.bf16.mxu0 %v539
    %912 = vmatpush1.bf16.msra.mxu0 %v538
    %913 = vmatprep.subr.bf16.mxu0 %v548
    %914 = vmatpush1.bf16.msra.mxu0 %v547
    %915 = vmatprep.subr.bf16.mxu0 %v557
    %916 = vmatpush1.bf16.msra.mxu0 %v556
    %917 = vmatprep.subr.bf16.mxu0 %v566
    %918 = vmatpush1.bf16.msra.mxu0 %v565
    %919 = vmatprep.subr.bf16.mxu0 %v575
    %920 = vmatpush1.bf16.msra.mxu0 %v574
    %921 = vmatprep.subr.bf16.mxu0 %v584
    %922 = vmatpush1.bf16.msra.mxu0 %v583
    %923 = vmatprep.subr.bf16.mxu0 %v593
    %924 = vmatpush1.bf16.msra.mxu0 %v592
    %925 = vmatprep.subr.bf16.mxu0 %v602
    %926 = vmatpush1.bf16.msra.mxu0 %v601
    %927 = vmatprep.subr.bf16.mxu0 %v611
    %928 = vmatpush1.bf16.msra.mxu0 %v610
    %929 = vmatprep.subr.bf16.mxu0 0
    %930 = vmatpush1.bf16.msra.mxu0 0
    %931 = vmatprep.subr.bf16.mxu0 0
    %932 = vmatpush1.bf16.msra.mxu0 0
    %933 = vmatprep.subr.bf16.mxu0 0
    %934 = vmatpush1.bf16.msra.mxu0 0
    %935 = vmatprep.subr.bf16.mxu0 0
    %936 = vmatpush1.bf16.msra.mxu0 0
    %937 = vmatprep.subr.bf16.mxu0 0
    %938 = vmatpush1.bf16.msra.mxu0 0
    %939 = vmatprep.subr.bf16.mxu0 0
    %940 = vmatpush1.bf16.msra.mxu0 0
    %941 = vmatprep.subr.bf16.mxu0 0
    %942 = vmatpush1.bf16.msra.mxu0 0
    %943 = vmatprep.mubr.bf16.mxu0 %v909
    %944 = vmatmul.mubr.bf16.gmra.mrb[0].mxu0 %v70
    %v945 = vpop.f32.mrb[0].mxu0
    %v946 = vadd.f32 %v739, %v945
    %v947 = vpop.f32.mrb[0].mxu0
    %v948 = vadd.f32 %v741, %v947
    %v949 = vpop.f32.mrb[0].mxu0
    %v950 = vpop.f32.mrb[0].mxu0
    %951 = vdwg.mxu0
    %952 = vmatprep.subr.bf16.mxu0 %v541
    %953 = vmatpush1.bf16.msra.mxu0 %v540
    %954 = vmatprep.subr.bf16.mxu0 %v550
    %955 = vmatpush1.bf16.msra.mxu0 %v549
    %956 = vmatprep.subr.bf16.mxu0 %v559
    %957 = vmatpush1.bf16.msra.mxu0 %v558
    %958 = vmatprep.subr.bf16.mxu0 %v568
    %959 = vmatpush1.bf16.msra.mxu0 %v567
    %960 = vmatprep.subr.bf16.mxu0 %v577
    %961 = vmatpush1.bf16.msra.mxu0 %v576
    %962 = vmatprep.subr.bf16.mxu0 %v586
    %963 = vmatpush1.bf16.msra.mxu0 %v585
    %964 = vmatprep.subr.bf16.mxu0 %v595
    %965 = vmatpush1.bf16.msra.mxu0 %v594
    %966 = vmatprep.subr.bf16.mxu0 %v604
    %967 = vmatpush1.bf16.msra.mxu0 %v603
    %968 = vmatprep.subr.bf16.mxu0 %v613
    %969 = vmatpush1.bf16.msra.mxu0 %v612
    %970 = vmatprep.subr.bf16.mxu0 0
    %971 = vmatpush1.bf16.msra.mxu0 0
    %972 = vmatprep.subr.bf16.mxu0 0
    %973 = vmatpush1.bf16.msra.mxu0 0
    %974 = vmatprep.subr.bf16.mxu0 0
    %975 = vmatpush1.bf16.msra.mxu0 0
    %976 = vmatprep.subr.bf16.mxu0 0
    %977 = vmatpush1.bf16.msra.mxu0 0
    %978 = vmatprep.subr.bf16.mxu0 0
    %979 = vmatpush1.bf16.msra.mxu0 0
    %980 = vmatprep.subr.bf16.mxu0 0
    %981 = vmatpush1.bf16.msra.mxu0 0
    %982 = vmatprep.subr.bf16.mxu0 0
    %983 = vmatpush1.bf16.msra.mxu0 0
    %984 = vmatprep.mubr.bf16.mxu0 %v909
    %985 = vmatmul.mubr.bf16.gmra.mrb[0].mxu0 %v70
    %v986 = vpop.f32.mrb[0].mxu0
    %v987 = vadd.f32 %v780, %v986
    %v988 = vpop.f32.mrb[0].mxu0
    %v989 = vadd.f32 %v782, %v988
    %v990 = vpop.f32.mrb[0].mxu0
    %v991 = vpop.f32.mrb[0].mxu0
    %992 = vdwg.mxu0
    %993 = vmatprep.subr.bf16.mxu0 %v543
    %994 = vmatpush1.bf16.msra.mxu0 %v542
    %995 = vmatprep.subr.bf16.mxu0 %v552
    %996 = vmatpush1.bf16.msra.mxu0 %v551
    %997 = vmatprep.subr.bf16.mxu0 %v561
    %998 = vmatpush1.bf16.msra.mxu0 %v560
    %999 = vmatprep.subr.bf16.mxu0 %v570
    %1000 = vmatpush1.bf16.msra.mxu0 %v569
    %1001 = vmatprep.subr.bf16.mxu0 %v579
    %1002 = vmatpush1.bf16.msra.mxu0 %v578
    %1003 = vmatprep.subr.bf16.mxu0 %v588
    %1004 = vmatpush1.bf16.msra.mxu0 %v587
    %1005 = vmatprep.subr.bf16.mxu0 %v597
    %1006 = vmatpush1.bf16.msra.mxu0 %v596
    %1007 = vmatprep.subr.bf16.mxu0 %v606
    %1008 = vmatpush1.bf16.msra.mxu0 %v605
    %1009 = vmatprep.subr.bf16.mxu0 %v615
    %1010 = vmatpush1.bf16.msra.mxu0 %v614
    %1011 = vmatprep.subr.bf16.mxu0 0
    %1012 = vmatpush1.bf16.msra.mxu0 0
    %1013 = vmatprep.subr.bf16.mxu0 0
    %1014 = vmatpush1.bf16.msra.mxu0 0
    %1015 = vmatprep.subr.bf16.mxu0 0
    %1016 = vmatpush1.bf16.msra.mxu0 0
    %1017 = vmatprep.subr.bf16.mxu0 0
    %1018 = vmatpush1.bf16.msra.mxu0 0
    %1019 = vmatprep.subr.bf16.mxu0 0
    %1020 = vmatpush1.bf16.msra.mxu0 0
    %1021 = vmatprep.subr.bf16.mxu0 0
    %1022 = vmatpush1.bf16.msra.mxu0 0
    %1023 = vmatprep.subr.bf16.mxu0 0
    %1024 = vmatpush1.bf16.msra.mxu0 0
    %1025 = vmatprep.mubr.bf16.mxu0 %v909
    %1026 = vmatmul.mubr.bf16.gmra.mrb[0].mxu0 %v70
    %v1027 = vpop.f32.mrb[0].mxu0
    %v1028 = vadd.f32 %v821, %v1027
    %v1029 = vpop.f32.mrb[0].mxu0
    %v1030 = vadd.f32 %v823, %v1029
    %v1031 = vpop.f32.mrb[0].mxu0
    %v1032 = vpop.f32.mrb[0].mxu0
    %1033 = vdwg.mxu0
    %1034 = vmatprep.subr.bf16.mxu0 %v545
    %1035 = vmatpush1.bf16.msra.mxu0 %v544
    %1036 = vmatprep.subr.bf16.mxu0 %v554
    %1037 = vmatpush1.bf16.msra.mxu0 %v553
    %1038 = vmatprep.subr.bf16.mxu0 %v563
    %1039 = vmatpush1.bf16.msra.mxu0 %v562
    %1040 = vmatprep.subr.bf16.mxu0 %v572
    %1041 = vmatpush1.bf16.msra.mxu0 %v571
    %1042 = vmatprep.subr.bf16.mxu0 %v581
    %1043 = vmatpush1.bf16.msra.mxu0 %v580
    %1044 = vmatprep.subr.bf16.mxu0 %v590
    %1045 = vmatpush1.bf16.msra.mxu0 %v589
    %1046 = vmatprep.subr.bf16.mxu0 %v599
    %1047 = vmatpush1.bf16.msra.mxu0 %v598
    %1048 = vmatprep.subr.bf16.mxu0 %v608
    %1049 = vmatpush1.bf16.msra.mxu0 %v607
    %1050 = vmatprep.subr.bf16.mxu0 %v617
    %1051 = vmatpush1.bf16.msra.mxu0 %v616
    %1052 = vmatprep.subr.bf16.mxu0 0
    %1053 = vmatpush1.bf16.msra.mxu0 0
    %1054 = vmatprep.subr.bf16.mxu0 0
    %1055 = vmatpush1.bf16.msra.mxu0 0
    %1056 = vmatprep.subr.bf16.mxu0 0
    %1057 = vmatpush1.bf16.msra.mxu0 0
    %1058 = vmatprep.subr.bf16.mxu0 0
    %1059 = vmatpush1.bf16.msra.mxu0 0
    %1060 = vmatprep.subr.bf16.mxu0 0
    %1061 = vmatpush1.bf16.msra.mxu0 0
    %1062 = vmatprep.subr.bf16.mxu0 0
    %1063 = vmatpush1.bf16.msra.mxu0 0
    %1064 = vmatprep.subr.bf16.mxu0 0
    %1065 = vmatpush1.bf16.msra.mxu0 0
    %1066 = vmatprep.mubr.bf16.mxu0 %v909
    %1067 = vmatmul.mubr.bf16.gmra.mrb[0].mxu0 %v70
    %v1068 = vpop.f32.mrb[0].mxu0
    %v1069 = vadd.f32 %v862, %v1068
    %v1070 = vpop.f32.mrb[0].mxu0
    %v1071 = vadd.f32 %v864, %v1070
    %v1072 = vpop.f32.mrb[0].mxu0
    %v1073 = vpop.f32.mrb[0].mxu0
    %1074 = vdwg.mxu0
    %1075 = vmatprep.subr.bf16.mxu0 0
    %1076 = vmatpush1.bf16.msra.mxu0 %v546
    %1077 = vmatprep.subr.bf16.mxu0 0
    %1078 = vmatpush1.bf16.msra.mxu0 %v555
    %1079 = vmatprep.subr.bf16.mxu0 0
    %1080 = vmatpush1.bf16.msra.mxu0 %v564
    %1081 = vmatprep.subr.bf16.mxu0 0
    %1082 = vmatpush1.bf16.msra.mxu0 %v573
    %1083 = vmatprep.subr.bf16.mxu0 0
    %1084 = vmatpush1.bf16.msra.mxu0 %v582
    %1085 = vmatprep.subr.bf16.mxu0 0
    %1086 = vmatpush1.bf16.msra.mxu0 %v591
    %1087 = vmatprep.subr.bf16.mxu0 0
    %1088 = vmatpush1.bf16.msra.mxu0 %v600
    %1089 = vmatprep.subr.bf16.mxu0 0
    %1090 = vmatpush1.bf16.msra.mxu0 %v609
    %1091 = vmatprep.subr.bf16.mxu0 0
    %1092 = vmatpush1.bf16.msra.mxu0 %v618
    %1093 = vmatprep.subr.bf16.mxu0 0
    %1094 = vmatpush1.bf16.msra.mxu0 0
    %1095 = vmatprep.subr.bf16.mxu0 0
    %1096 = vmatpush1.bf16.msra.mxu0 0
    %1097 = vmatprep.subr.bf16.mxu0 0
    %1098 = vmatpush1.bf16.msra.mxu0 0
    %1099 = vmatprep.subr.bf16.mxu0 0
    %1100 = vmatpush1.bf16.msra.mxu0 0
    %1101 = vmatprep.subr.bf16.mxu0 0
    %1102 = vmatpush1.bf16.msra.mxu0 0
    %1103 = vmatprep.subr.bf16.mxu0 0
    %1104 = vmatpush1.bf16.msra.mxu0 0
    %1105 = vmatprep.subr.bf16.mxu0 0
    %1106 = vmatpush1.bf16.msra.mxu0 0
    %1107 = vmatprep.mubr.bf16.mxu0 %v909
    %1108 = vmatmul.mubr.bf16.gmra.mrb[0].mxu0 %v70
    %v1109 = vpop.f32.mrb[0].mxu0
    %v1110 = vadd.f32 %v903, %v1109
    %v1111 = vpop.f32.mrb[0].mxu0
    %v1112 = vpop.f32.mrb[0].mxu0
    %v1113 = vpop.f32.mrb[0].mxu0
    %1114 = vdwg.mxu0
    %v1205 = vunpack.c.l.b16 %v196
    %v1206 = vunpack.c.h.b16 %v196
    %v1207 = vunpack.c.l.b16 %v197
    %v1208 = vunpack.c.h.b16 %v197
    %v1209 = vunpack.c.l.b16 %v198
    %v1210 = vunpack.c.h.b16 %v198
    %v1211 = vunpack.c.l.b16 %v199
    %v1212 = vunpack.c.h.b16 %v199
    %v1213 = vunpack.c.l.b16 %v200
    %v1214 = vunpack.c.l.b16 %v201
    %v1215 = vunpack.c.h.b16 %v201
    %v1216 = vunpack.c.l.b16 %v202
    %v1217 = vunpack.c.h.b16 %v202
    %v1218 = vunpack.c.l.b16 %v203
    %v1219 = vunpack.c.h.b16 %v203
    %v1220 = vunpack.c.l.b16 %v204
    %v1221 = vunpack.c.h.b16 %v204
    %v1222 = vunpack.c.l.b16 %v205
    %v1223 = vunpack.c.l.b16 %v206
    %v1224 = vunpack.c.h.b16 %v206
    %v1225 = vunpack.c.l.b16 %v207
    %v1226 = vunpack.c.h.b16 %v207
    %v1227 = vunpack.c.l.b16 %v208
    %v1228 = vunpack.c.h.b16 %v208
    %v1229 = vunpack.c.l.b16 %v209
    %v1230 = vunpack.c.h.b16 %v209
    %v1231 = vunpack.c.l.b16 %v210
    %v1232 = vunpack.c.l.b16 %v211
    %v1233 = vunpack.c.h.b16 %v211
    %v1234 = vunpack.c.l.b16 %v212
    %v1235 = vunpack.c.h.b16 %v212
    %v1236 = vunpack.c.l.b16 %v213
    %v1237 = vunpack.c.h.b16 %v213
    %v1238 = vunpack.c.l.b16 %v214
    %v1239 = vunpack.c.h.b16 %v214
    %v1240 = vunpack.c.l.b16 %v215
    %v1241 = vunpack.c.l.b16 %v216
    %v1242 = vunpack.c.h.b16 %v216
    %v1243 = vunpack.c.l.b16 %v217
    %v1244 = vunpack.c.h.b16 %v217
    %v1245 = vunpack.c.l.b16 %v218
    %v1246 = vunpack.c.h.b16 %v218
    %v1247 = vunpack.c.l.b16 %v219
    %v1248 = vunpack.c.h.b16 %v219
    %v1249 = vunpack.c.l.b16 %v220
    %v1250 = vunpack.c.l.b16 %v221
    %v1251 = vunpack.c.h.b16 %v221
    %v1252 = vunpack.c.l.b16 %v222
    %v1253 = vunpack.c.h.b16 %v222
    %v1254 = vunpack.c.l.b16 %v223
    %v1255 = vunpack.c.h.b16 %v223
    %v1256 = vunpack.c.l.b16 %v224
    %v1257 = vunpack.c.h.b16 %v224
    %v1258 = vunpack.c.l.b16 %v225
    %v1259 = vunpack.c.l.b16 %v226
    %v1260 = vunpack.c.h.b16 %v226
    %v1261 = vunpack.c.l.b16 %v227
    %v1262 = vunpack.c.h.b16 %v227
    %v1263 = vunpack.c.l.b16 %v228
    %v1264 = vunpack.c.h.b16 %v228
    %v1265 = vunpack.c.l.b16 %v229
    %v1266 = vunpack.c.h.b16 %v229
    %v1267 = vunpack.c.l.b16 %v230
    %v1268 = vunpack.c.l.b16 %v231
    %v1269 = vunpack.c.h.b16 %v231
    %v1270 = vunpack.c.l.b16 %v232
    %v1271 = vunpack.c.h.b16 %v232
    %v1272 = vunpack.c.l.b16 %v233
    %v1273 = vunpack.c.h.b16 %v233
    %v1274 = vunpack.c.l.b16 %v234
    %v1275 = vunpack.c.h.b16 %v234
    %v1276 = vunpack.c.l.b16 %v235
    %v1277 = vunpack.c.l.b16 %v236
    %v1278 = vunpack.c.h.b16 %v236
    %v1279 = vunpack.c.l.b16 %v237
    %v1280 = vunpack.c.h.b16 %v237
    %v1281 = vunpack.c.l.b16 %v238
    %v1282 = vunpack.c.h.b16 %v238
    %v1283 = vunpack.c.l.b16 %v239
    %v1284 = vunpack.c.h.b16 %v239
    %v1285 = vunpack.c.l.b16 %v240
    %v1286 = vunpack.c.l.b16 %v241
    %v1287 = vunpack.c.h.b16 %v241
    %v1288 = vunpack.c.l.b16 %v242
    %v1289 = vunpack.c.h.b16 %v242
    %v1290 = vunpack.c.l.b16 %v243
    %v1291 = vunpack.c.h.b16 %v243
    %v1292 = vunpack.c.l.b16 %v244
    %v1293 = vunpack.c.h.b16 %v244
    %v1294 = vunpack.c.l.b16 %v245
    %v1295 = vunpack.c.l.b16 %v246
    %v1296 = vunpack.c.h.b16 %v246
    %v1297 = vunpack.c.l.b16 %v247
    %v1298 = vunpack.c.h.b16 %v247
    %v1299 = vunpack.c.l.b16 %v248
    %v1300 = vunpack.c.h.b16 %v248
    %v1301 = vunpack.c.l.b16 %v249
    %v1302 = vunpack.c.h.b16 %v249
    %v1303 = vunpack.c.l.b16 %v250
    %v1304 = vunpack.c.l.b16 %v251
    %v1305 = vunpack.c.h.b16 %v251
    %v1306 = vunpack.c.l.b16 %v252
    %v1307 = vunpack.c.h.b16 %v252
    %v1308 = vunpack.c.l.b16 %v253
    %v1309 = vunpack.c.h.b16 %v253
    %v1310 = vunpack.c.l.b16 %v254
    %v1311 = vunpack.c.h.b16 %v254
    %v1312 = vunpack.c.l.b16 %v255
    %v1313 = vunpack.c.l.b16 %v256
    %v1314 = vunpack.c.h.b16 %v256
    %v1315 = vunpack.c.l.b16 %v257
    %v1316 = vunpack.c.h.b16 %v257
    %v1317 = vunpack.c.l.b16 %v258
    %v1318 = vunpack.c.h.b16 %v258
    %v1319 = vunpack.c.l.b16 %v259
    %v1320 = vunpack.c.h.b16 %v259
    %v1321 = vunpack.c.l.b16 %v260
    %v1322 = vunpack.c.l.b16 %v261
    %v1323 = vunpack.c.h.b16 %v261
    %v1324 = vunpack.c.l.b16 %v262
    %v1325 = vunpack.c.h.b16 %v262
    %v1326 = vunpack.c.l.b16 %v263
    %v1327 = vunpack.c.h.b16 %v263
    %v1328 = vunpack.c.l.b16 %v264
    %v1329 = vunpack.c.h.b16 %v264
    %v1330 = vunpack.c.l.b16 %v265
    %v1331 = vunpack.c.l.b16 %v266
    %v1332 = vunpack.c.h.b16 %v266
    %v1333 = vunpack.c.l.b16 %v267
    %v1334 = vunpack.c.h.b16 %v267
    %v1335 = vunpack.c.l.b16 %v268
    %v1336 = vunpack.c.h.b16 %v268
    %v1337 = vunpack.c.l.b16 %v269
    %v1338 = vunpack.c.h.b16 %v269
    %v1339 = vunpack.c.l.b16 %v270
    %v1340 = vunpack.c.l.b16 %v271
    %v1341 = vunpack.c.h.b16 %v271
    %v1342 = vunpack.c.l.b16 %v272
    %v1343 = vunpack.c.h.b16 %v272
    %v1344 = vunpack.c.l.b16 %v273
    %v1345 = vunpack.c.h.b16 %v273
    %v1346 = vunpack.c.l.b16 %v274
    %v1347 = vunpack.c.h.b16 %v274
    %v1348 = vunpack.c.l.b16 %v275
    %v1349 = vunpack.c.l.b16 %v276
    %v1350 = vunpack.c.h.b16 %v276
    %v1351 = vunpack.c.l.b16 %v277
    %v1352 = vunpack.c.h.b16 %v277
    %v1353 = vunpack.c.l.b16 %v278
    %v1354 = vunpack.c.h.b16 %v278
    %v1355 = vunpack.c.l.b16 %v279
    %v1356 = vunpack.c.h.b16 %v279
    %v1357 = vunpack.c.l.b16 %v280
    %v1358 = vunpack.c.l.b16 %v281
    %v1359 = vunpack.c.h.b16 %v281
    %v1360 = vunpack.c.l.b16 %v282
    %v1361 = vunpack.c.h.b16 %v282
    %v1362 = vunpack.c.l.b16 %v283
    %v1363 = vunpack.c.h.b16 %v283
    %v1364 = vunpack.c.l.b16 %v284
    %v1365 = vunpack.c.h.b16 %v284
    %v1366 = vunpack.c.l.b16 %v285
    %v1367 = vpack.c.b16 %v1214, %v1205
    %v1368 = vpack.c.b16 %v1215, %v1206
    %v1369 = vpack.c.b16 %v1216, %v1207
    %v1370 = vpack.c.b16 %v1217, %v1208
    %v1371 = vpack.c.b16 %v1218, %v1209
    %v1372 = vpack.c.b16 %v1219, %v1210
    %v1373 = vpack.c.b16 %v1220, %v1211
    %v1374 = vpack.c.b16 %v1221, %v1212
    %v1375 = vpack.c.b16 %v1222, %v1213
    %v1376 = vpack.c.b16 %v1232, %v1223
    %v1377 = vpack.c.b16 %v1233, %v1224
    %v1378 = vpack.c.b16 %v1234, %v1225
    %v1379 = vpack.c.b16 %v1235, %v1226
    %v1380 = vpack.c.b16 %v1236, %v1227
    %v1381 = vpack.c.b16 %v1237, %v1228
    %v1382 = vpack.c.b16 %v1238, %v1229
    %v1383 = vpack.c.b16 %v1239, %v1230
    %v1384 = vpack.c.b16 %v1240, %v1231
    %v1385 = vpack.c.b16 %v1250, %v1241
    %v1386 = vpack.c.b16 %v1251, %v1242
    %v1387 = vpack.c.b16 %v1252, %v1243
    %v1388 = vpack.c.b16 %v1253, %v1244
    %v1389 = vpack.c.b16 %v1254, %v1245
    %v1390 = vpack.c.b16 %v1255, %v1246
    %v1391 = vpack.c.b16 %v1256, %v1247
    %v1392 = vpack.c.b16 %v1257, %v1248
    %v1393 = vpack.c.b16 %v1258, %v1249
    %v1394 = vpack.c.b16 %v1268, %v1259
    %v1395 = vpack.c.b16 %v1269, %v1260
    %v1396 = vpack.c.b16 %v1270, %v1261
    %v1397 = vpack.c.b16 %v1271, %v1262
    %v1398 = vpack.c.b16 %v1272, %v1263
    %v1399 = vpack.c.b16 %v1273, %v1264
    %v1400 = vpack.c.b16 %v1274, %v1265
    %v1401 = vpack.c.b16 %v1275, %v1266
    %v1402 = vpack.c.b16 %v1276, %v1267
    %v1403 = vpack.c.b16 %v1286, %v1277
    %v1404 = vpack.c.b16 %v1287, %v1278
    %v1405 = vpack.c.b16 %v1288, %v1279
    %v1406 = vpack.c.b16 %v1289, %v1280
    %v1407 = vpack.c.b16 %v1290, %v1281
    %v1408 = vpack.c.b16 %v1291, %v1282
    %v1409 = vpack.c.b16 %v1292, %v1283
    %v1410 = vpack.c.b16 %v1293, %v1284
    %v1411 = vpack.c.b16 %v1294, %v1285
    %v1412 = vpack.c.b16 %v1304, %v1295
    %v1413 = vpack.c.b16 %v1305, %v1296
    %v1414 = vpack.c.b16 %v1306, %v1297
    %v1415 = vpack.c.b16 %v1307, %v1298
    %v1416 = vpack.c.b16 %v1308, %v1299
    %v1417 = vpack.c.b16 %v1309, %v1300
    %v1418 = vpack.c.b16 %v1310, %v1301
    %v1419 = vpack.c.b16 %v1311, %v1302
    %v1420 = vpack.c.b16 %v1312, %v1303
    %v1421 = vpack.c.b16 %v1322, %v1313
    %v1422 = vpack.c.b16 %v1323, %v1314
    %v1423 = vpack.c.b16 %v1324, %v1315
    %v1424 = vpack.c.b16 %v1325, %v1316
    %v1425 = vpack.c.b16 %v1326, %v1317
    %v1426 = vpack.c.b16 %v1327, %v1318
    %v1427 = vpack.c.b16 %v1328, %v1319
    %v1428 = vpack.c.b16 %v1329, %v1320
    %v1429 = vpack.c.b16 %v1330, %v1321
    %v1430 = vpack.c.b16 %v1340, %v1331
    %v1431 = vpack.c.b16 %v1341, %v1332
    %v1432 = vpack.c.b16 %v1342, %v1333
    %v1433 = vpack.c.b16 %v1343, %v1334
    %v1434 = vpack.c.b16 %v1344, %v1335
    %v1435 = vpack.c.b16 %v1345, %v1336
    %v1436 = vpack.c.b16 %v1346, %v1337
    %v1437 = vpack.c.b16 %v1347, %v1338
    %v1438 = vpack.c.b16 %v1348, %v1339
    %v1439 = vpack.c.b16 %v1358, %v1349
    %v1440 = vpack.c.b16 %v1359, %v1350
    %v1441 = vpack.c.b16 %v1360, %v1351
    %v1442 = vpack.c.b16 %v1361, %v1352
    %v1443 = vpack.c.b16 %v1362, %v1353
    %v1444 = vpack.c.b16 %v1363, %v1354
    %v1445 = vpack.c.b16 %v1364, %v1355
    %v1446 = vpack.c.b16 %v1365, %v1356
    %v1447 = vpack.c.b16 %v1366, %v1357
    %1529 = vmatprep.subr.bf16.mxu0 %v1368
    %1530 = vmatpush1.bf16.msra.mxu0 %v1367
    %1531 = vmatprep.subr.bf16.mxu0 %v1377
    %1532 = vmatpush1.bf16.msra.mxu0 %v1376
    %1533 = vmatprep.subr.bf16.mxu0 %v1386
    %1534 = vmatpush1.bf16.msra.mxu0 %v1385
    %1535 = vmatprep.subr.bf16.mxu0 %v1395
    %1536 = vmatpush1.bf16.msra.mxu0 %v1394
    %1537 = vmatprep.subr.bf16.mxu0 %v1404
    %1538 = vmatpush1.bf16.msra.mxu0 %v1403
    %1539 = vmatprep.subr.bf16.mxu0 %v1413
    %1540 = vmatpush1.bf16.msra.mxu0 %v1412
    %1541 = vmatprep.subr.bf16.mxu0 %v1422
    %1542 = vmatpush1.bf16.msra.mxu0 %v1421
    %1543 = vmatprep.subr.bf16.mxu0 %v1431
    %1544 = vmatpush1.bf16.msra.mxu0 %v1430
    %1545 = vmatprep.subr.bf16.mxu0 %v1440
    %1546 = vmatpush1.bf16.msra.mxu0 %v1439
    %1547 = vmatprep.subr.bf16.mxu0 0
    %1548 = vmatpush1.bf16.msra.mxu0 0
    %1549 = vmatprep.subr.bf16.mxu0 0
    %1550 = vmatpush1.bf16.msra.mxu0 0
    %1551 = vmatprep.subr.bf16.mxu0 0
    %1552 = vmatpush1.bf16.msra.mxu0 0
    %1553 = vmatprep.subr.bf16.mxu0 0
    %1554 = vmatpush1.bf16.msra.mxu0 0
    %1555 = vmatprep.subr.bf16.mxu0 0
    %1556 = vmatpush1.bf16.msra.mxu0 0
    %1557 = vmatprep.subr.bf16.mxu0 0
    %1558 = vmatpush1.bf16.msra.mxu0 0
    %1559 = vmatprep.subr.bf16.mxu0 0
    %1560 = vmatpush1.bf16.msra.mxu0 0
    %1561 = vmatprep.mubr.bf16.mxu0 %v909
    %1562 = vmatmul.mubr.bf16.gmra.mrb[0].mxu0 %v70
    %v1563 = vpop.f32.mrb[0].mxu0
    %v1564 = vadd.f32 0.0, %v1563
    %v1565 = vpop.f32.mrb[0].mxu0
    %v1566 = vadd.f32 0.0, %v1565
    %v1567 = vpop.f32.mrb[0].mxu0
    %v1568 = vpop.f32.mrb[0].mxu0
    %1569 = vdwg.mxu0
    %1570 = vmatprep.subr.bf16.mxu0 %v1370
    %1571 = vmatpush1.bf16.msra.mxu0 %v1369
    %1572 = vmatprep.subr.bf16.mxu0 %v1379
    %1573 = vmatpush1.bf16.msra.mxu0 %v1378
    %1574 = vmatprep.subr.bf16.mxu0 %v1388
    %1575 = vmatpush1.bf16.msra.mxu0 %v1387
    %1576 = vmatprep.subr.bf16.mxu0 %v1397
    %1577 = vmatpush1.bf16.msra.mxu0 %v1396
    %1578 = vmatprep.subr.bf16.mxu0 %v1406
    %1579 = vmatpush1.bf16.msra.mxu0 %v1405
    %1580 = vmatprep.subr.bf16.mxu0 %v1415
    %1581 = vmatpush1.bf16.msra.mxu0 %v1414
    %1582 = vmatprep.subr.bf16.mxu0 %v1424
    %1583 = vmatpush1.bf16.msra.mxu0 %v1423
    %1584 = vmatprep.subr.bf16.mxu0 %v1433
    %1585 = vmatpush1.bf16.msra.mxu0 %v1432
    %1586 = vmatprep.subr.bf16.mxu0 %v1442
    %1587 = vmatpush1.bf16.msra.mxu0 %v1441
    %1588 = vmatprep.subr.bf16.mxu0 0
    %1589 = vmatpush1.bf16.msra.mxu0 0
    %1590 = vmatprep.subr.bf16.mxu0 0
    %1591 = vmatpush1.bf16.msra.mxu0 0
    %1592 = vmatprep.subr.bf16.mxu0 0
    %1593 = vmatpush1.bf16.msra.mxu0 0
    %1594 = vmatprep.subr.bf16.mxu0 0
    %1595 = vmatpush1.bf16.msra.mxu0 0
    %1596 = vmatprep.subr.bf16.mxu0 0
    %1597 = vmatpush1.bf16.msra.mxu0 0
    %1598 = vmatprep.subr.bf16.mxu0 0
    %1599 = vmatpush1.bf16.msra.mxu0 0
    %1600 = vmatprep.subr.bf16.mxu0 0
    %1601 = vmatpush1.bf16.msra.mxu0 0
    %1602 = vmatprep.mubr.bf16.mxu0 %v909
    %1603 = vmatmul.mubr.bf16.gmra.mrb[0].mxu0 %v70
    %v1604 = vpop.f32.mrb[0].mxu0
    %v1605 = vadd.f32 0.0, %v1604
    %v1606 = vpop.f32.mrb[0].mxu0
    %v1607 = vadd.f32 0.0, %v1606
    %v1608 = vpop.f32.mrb[0].mxu0
    %v1609 = vpop.f32.mrb[0].mxu0
    %1610 = vdwg.mxu0
    %1611 = vmatprep.subr.bf16.mxu0 %v1372
    %1612 = vmatpush1.bf16.msra.mxu0 %v1371
    %1613 = vmatprep.subr.bf16.mxu0 %v1381
    %1614 = vmatpush1.bf16.msra.mxu0 %v1380
    %1615 = vmatprep.subr.bf16.mxu0 %v1390
    %1616 = vmatpush1.bf16.msra.mxu0 %v1389
    %1617 = vmatprep.subr.bf16.mxu0 %v1399
    %1618 = vmatpush1.bf16.msra.mxu0 %v1398
    %1619 = vmatprep.subr.bf16.mxu0 %v1408
    %1620 = vmatpush1.bf16.msra.mxu0 %v1407
    %1621 = vmatprep.subr.bf16.mxu0 %v1417
    %1622 = vmatpush1.bf16.msra.mxu0 %v1416
    %1623 = vmatprep.subr.bf16.mxu0 %v1426
    %1624 = vmatpush1.bf16.msra.mxu0 %v1425
    %1625 = vmatprep.subr.bf16.mxu0 %v1435
    %1626 = vmatpush1.bf16.msra.mxu0 %v1434
    %1627 = vmatprep.subr.bf16.mxu0 %v1444
    %1628 = vmatpush1.bf16.msra.mxu0 %v1443
    %1629 = vmatprep.subr.bf16.mxu0 0
    %1630 = vmatpush1.bf16.msra.mxu0 0
    %1631 = vmatprep.subr.bf16.mxu0 0
    %1632 = vmatpush1.bf16.msra.mxu0 0
    %1633 = vmatprep.subr.bf16.mxu0 0
    %1634 = vmatpush1.bf16.msra.mxu0 0
    %1635 = vmatprep.subr.bf16.mxu0 0
    %1636 = vmatpush1.bf16.msra.mxu0 0
    %1637 = vmatprep.subr.bf16.mxu0 0
    %1638 = vmatpush1.bf16.msra.mxu0 0
    %1639 = vmatprep.subr.bf16.mxu0 0
    %1640 = vmatpush1.bf16.msra.mxu0 0
    %1641 = vmatprep.subr.bf16.mxu0 0
    %1642 = vmatpush1.bf16.msra.mxu0 0
    %1643 = vmatprep.mubr.bf16.mxu0 %v909
    %1644 = vmatmul.mubr.bf16.gmra.mrb[0].mxu0 %v70
    %v1645 = vpop.f32.mrb[0].mxu0
    %v1646 = vadd.f32 0.0, %v1645
    %v1647 = vpop.f32.mrb[0].mxu0
    %v1648 = vadd.f32 0.0, %v1647
    %v1649 = vpop.f32.mrb[0].mxu0
    %v1650 = vpop.f32.mrb[0].mxu0
    %1651 = vdwg.mxu0
    %1652 = vmatprep.subr.bf16.mxu0 %v1374
    %1653 = vmatpush1.bf16.msra.mxu0 %v1373
    %1654 = vmatprep.subr.bf16.mxu0 %v1383
    %1655 = vmatpush1.bf16.msra.mxu0 %v1382
    %1656 = vmatprep.subr.bf16.mxu0 %v1392
    %1657 = vmatpush1.bf16.msra.mxu0 %v1391
    %1658 = vmatprep.subr.bf16.mxu0 %v1401
    %1659 = vmatpush1.bf16.msra.mxu0 %v1400
    %1660 = vmatprep.subr.bf16.mxu0 %v1410
    %1661 = vmatpush1.bf16.msra.mxu0 %v1409
    %1662 = vmatprep.subr.bf16.mxu0 %v1419
    %1663 = vmatpush1.bf16.msra.mxu0 %v1418
    %1664 = vmatprep.subr.bf16.mxu0 %v1428
    %1665 = vmatpush1.bf16.msra.mxu0 %v1427
    %1666 = vmatprep.subr.bf16.mxu0 %v1437
    %1667 = vmatpush1.bf16.msra.mxu0 %v1436
    %1668 = vmatprep.subr.bf16.mxu0 %v1446
    %1669 = vmatpush1.bf16.msra.mxu0 %v1445
    %1670 = vmatprep.subr.bf16.mxu0 0
    %1671 = vmatpush1.bf16.msra.mxu0 0
    %1672 = vmatprep.subr.bf16.mxu0 0
    %1673 = vmatpush1.bf16.msra.mxu0 0
    %1674 = vmatprep.subr.bf16.mxu0 0
    %1675 = vmatpush1.bf16.msra.mxu0 0
    %1676 = vmatprep.subr.bf16.mxu0 0
    %1677 = vmatpush1.bf16.msra.mxu0 0
    %1678 = vmatprep.subr.bf16.mxu0 0
    %1679 = vmatpush1.bf16.msra.mxu0 0
    %1680 = vmatprep.subr.bf16.mxu0 0
    %1681 = vmatpush1.bf16.msra.mxu0 0
    %1682 = vmatprep.subr.bf16.mxu0 0
    %1683 = vmatpush1.bf16.msra.mxu0 0
    %1684 = vmatprep.mubr.bf16.mxu0 %v909
    %1685 = vmatmul.mubr.bf16.gmra.mrb[0].mxu0 %v70
    %v1686 = vpop.f32.mrb[0].mxu0
    %v1687 = vadd.f32 0.0, %v1686
    %v1688 = vpop.f32.mrb[0].mxu0
    %v1689 = vadd.f32 0.0, %v1688
    %v1690 = vpop.f32.mrb[0].mxu0
    %v1691 = vpop.f32.mrb[0].mxu0
    %1692 = vdwg.mxu0
    %1693 = vmatprep.subr.bf16.mxu0 0
    %1694 = vmatpush1.bf16.msra.mxu0 %v1375
    %1695 = vmatprep.subr.bf16.mxu0 0
    %1696 = vmatpush1.bf16.msra.mxu0 %v1384
    %1697 = vmatprep.subr.bf16.mxu0 0
    %1698 = vmatpush1.bf16.msra.mxu0 %v1393
    %1699 = vmatprep.subr.bf16.mxu0 0
    %1700 = vmatpush1.bf16.msra.mxu0 %v1402
    %1701 = vmatprep.subr.bf16.mxu0 0
    %1702 = vmatpush1.bf16.msra.mxu0 %v1411
    %1703 = vmatprep.subr.bf16.mxu0 0
    %1704 = vmatpush1.bf16.msra.mxu0 %v1420
    %1705 = vmatprep.subr.bf16.mxu0 0
    %1706 = vmatpush1.bf16.msra.mxu0 %v1429
    %1707 = vmatprep.subr.bf16.mxu0 0
    %1708 = vmatpush1.bf16.msra.mxu0 %v1438
    %1709 = vmatprep.subr.bf16.mxu0 0
    %1710 = vmatpush1.bf16.msra.mxu0 %v1447
    %1711 = vmatprep.subr.bf16.mxu0 0
    %1712 = vmatpush1.bf16.msra.mxu0 0
    %1713 = vmatprep.subr.bf16.mxu0 0
    %1714 = vmatpush1.bf16.msra.mxu0 0
    %1715 = vmatprep.subr.bf16.mxu0 0
    %1716 = vmatpush1.bf16.msra.mxu0 0
    %1717 = vmatprep.subr.bf16.mxu0 0
    %1718 = vmatpush1.bf16.msra.mxu0 0
    %1719 = vmatprep.subr.bf16.mxu0 0
    %1720 = vmatpush1.bf16.msra.mxu0 0
    %1721 = vmatprep.subr.bf16.mxu0 0
    %1722 = vmatpush1.bf16.msra.mxu0 0
    %1723 = vmatprep.subr.bf16.mxu0 0
    %1724 = vmatpush1.bf16.msra.mxu0 0
    %1725 = vmatprep.mubr.bf16.mxu0 %v909
    %1726 = vmatmul.mubr.bf16.gmra.mrb[0].mxu0 %v70
    %v1727 = vpop.f32.mrb[0].mxu0
    %v1728 = vadd.f32 0.0, %v1727
    %v1729 = vpop.f32.mrb[0].mxu0
    %v1730 = vpop.f32.mrb[0].mxu0
    %v1731 = vpop.f32.mrb[0].mxu0
    %1732 = vdwg.mxu0
    %v1733 = vadd.f32 %v946, %v1564
    %v1734 = vadd.f32 %v948, %v1566
    %v1735 = vadd.f32 %v987, %v1605
    %v1736 = vadd.f32 %v989, %v1607
    %v1737 = vadd.f32 %v1028, %v1646
    %v1738 = vadd.f32 %v1030, %v1648
    %v1739 = vadd.f32 %v1069, %v1687
    %v1740 = vadd.f32 %v1071, %v1689
    %v1741 = vadd.f32 %v1110, %v1728
    %v1742 = vld [vmem:[%s3] sm:$0xff]
    %v1743 = vld [vmem:[%s3 + $0x8] sm:$0x1]
    %v1746 = vlaneseq
    %v1747 = vshrl.u32 %v1746, 7
    %v1748 = vsub.s32 0, %v1747
    %v1749 = vrot.slane %v1742, %v1748
    %v1750 = vlaneseq
    %v1751 = vshrl.u32 %v1750, 7
    %v1752 = vsub.s32 1, %v1751
    %v1753 = vrot.slane %v1742, %v1752
    %v1754 = vlaneseq
    %v1755 = vshrl.u32 %v1754, 7
    %v1756 = vsub.s32 2, %v1755
    %v1757 = vrot.slane %v1742, %v1756
    %v1758 = vlaneseq
    %v1759 = vshrl.u32 %v1758, 7
    %v1760 = vsub.s32 3, %v1759
    %v1761 = vrot.slane %v1742, %v1760
    %v1762 = vlaneseq
    %v1763 = vshrl.u32 %v1762, 7
    %v1764 = vsub.s32 4, %v1763
    %v1765 = vrot.slane %v1742, %v1764
    %v1766 = vlaneseq
    %v1767 = vshrl.u32 %v1766, 7
    %v1768 = vsub.s32 5, %v1767
    %v1769 = vrot.slane %v1742, %v1768
    %v1770 = vlaneseq
    %v1771 = vshrl.u32 %v1770, 7
    %v1772 = vsub.s32 6, %v1771
    %v1773 = vrot.slane %v1742, %v1772
    %v1774 = vlaneseq
    %v1775 = vshrl.u32 %v1774, 7
    %v1776 = vsub.s32 7, %v1775
    %v1777 = vrot.slane %v1742, %v1776
    %v1778 = vlaneseq
    %v1779 = vshrl.u32 %v1778, 7
    %v1780 = vsub.s32 0, %v1779
    %v1781 = vrot.slane %v1743, %v1780
    %v1791 = vadd.f32 %v1733, %v1749
    %v1792 = vadd.f32 %v1734, %v1753
    %v1793 = vadd.f32 %v1735, %v1757
    %v1794 = vadd.f32 %v1736, %v1761
    %v1795 = vadd.f32 %v1737, %v1765
    %v1796 = vadd.f32 %v1738, %v1769
    %v1797 = vadd.f32 %v1739, %v1773
    %v1798 = vadd.f32 %v1740, %v1777
    %v1799 = vadd.f32 %v1741, %v1781
    %v1800 = vtanh.pop %v1791
    %v1801 = vtanh.pop %v1792
    %v1802 = vtanh.pop %v1793
    %v1803 = vtanh.pop %v1794
    %v1804 = vtanh.pop %v1795
    %v1805 = vtanh.pop %v1796
    %v1806 = vtanh.pop %v1797
    %v1807 = vtanh.pop %v1798
    %v1808 = vtanh.pop %v1799
    %v1809 = vmul.f32 %v1800, 0.5
    %v1810 = vmul.f32 %v1801, 0.5
    %v1811 = vmul.f32 %v1802, 0.5
    %v1812 = vmul.f32 %v1803, 0.5
    %v1813 = vmul.f32 %v1804, 0.5
    %v1814 = vmul.f32 %v1805, 0.5
    %v1815 = vmul.f32 %v1806, 0.5
    %v1816 = vmul.f32 %v1807, 0.5
    %v1817 = vmul.f32 %v1808, 0.5
    %v1818 = vadd.f32 %v1809, 0.5
    %v1819 = vadd.f32 %v1810, 0.5
    %v1820 = vadd.f32 %v1811, 0.5
    %v1821 = vadd.f32 %v1812, 0.5
    %v1822 = vadd.f32 %v1813, 0.5
    %v1823 = vadd.f32 %v1814, 0.5
    %v1824 = vadd.f32 %v1815, 0.5
    %v1825 = vadd.f32 %v1816, 0.5
    %v1826 = vadd.f32 %v1817, 0.5
    %v1836 = vcombine.low %v1818, %v1819
    %v1837 = vcombine.low %v1820, %v1821
    %v1838 = vcombine.low %v1822, %v1823
    %v1839 = vcombine.low %v1824, %v1825
    %v1841 = vunpack.c.l.s4 1966171168
    %v1842 = vunpack.c.0.s8 %v1841
    %v1843 = vlaneseq
    %v1844 = vshrl.u32 %v1843, 7
    %v1845 = vsub.s32 %v1842, %v1844
    %v1846 = vrot.slane %v1836, %v1845
    %v1848 = vunpack.c.l.s4 1966171168
    %v1849 = vunpack.c.0.s8 %v1848
    %v1850 = vlaneseq
    %v1851 = vshrl.u32 %v1850, 7
    %v1852 = vsub.s32 %v1849, %v1851
    %v1853 = vrot.slane %v1837, %v1852
    %v1855 = vunpack.c.l.s4 1966171168
    %v1856 = vunpack.c.0.s8 %v1855
    %v1857 = vlaneseq
    %v1858 = vshrl.u32 %v1857, 7
    %v1859 = vsub.s32 %v1856, %v1858
    %v1860 = vrot.slane %v1838, %v1859
    %v1862 = vunpack.c.l.s4 1966171168
    %v1863 = vunpack.c.0.s8 %v1862
    %v1864 = vlaneseq
    %v1865 = vshrl.u32 %v1864, 7
    %v1866 = vsub.s32 %v1863, %v1865
    %v1867 = vrot.slane %v1839, %v1866
    %v1868 = vcombine.low %v1846, %v1853
    %v1869 = vcombine.low %v1860, %v1867
    %v1871 = vunpack.c.l.s4 1966171168
    %v1872 = vunpack.c.0.s8 %v1871
    %v1873 = vlaneseq
    %v1874 = vshrl.u32 %v1873, 7
    %v1875 = vsub.s32 %v1872, %v1874
    %v1876 = vrot.slane %v1868, %v1875
    %v1878 = vunpack.c.l.s4 1966171168
    %v1879 = vunpack.c.0.s8 %v1878
    %v1880 = vlaneseq
    %v1881 = vshrl.u32 %v1880, 7
    %v1882 = vsub.s32 %v1879, %v1881
    %v1883 = vrot.slane %v1869, %v1882
    %v1884 = vcombine.low %v1876, %v1883
    %v1886 = vunpack.c.l.s4 1966171168
    %v1887 = vunpack.c.0.s8 %v1886
    %v1888 = vlaneseq
    %v1889 = vshrl.u32 %v1888, 7
    %v1890 = vsub.s32 %v1887, %v1889
    %v1891 = vrot.slane %v1826, %v1890
    %v1893 = vunpack.c.l.s4 1966171168
    %v1894 = vunpack.c.0.s8 %v1893
    %v1895 = vlaneseq
    %v1896 = vshrl.u32 %v1895, 7
    %v1897 = vsub.s32 %v1894, %v1896
    %v1898 = vrot.slane %v1891, %v1897
    %1901 = vst [vmem:[#allocation8] sm:$0xff] %v1884
    %v1902 = vlaneseq
    %vm1903 = vcmp.ge.s32.totalorder %v1902, 0
    %vm1904 = vcmp.lt.s32.totalorder %v1902, 128
    %vm1905 = vmand %vm1903, %vm1904
    %1906 = vst.msk [vmem:[#allocation8 + $0x8] sm:$0x1] %vm1905, %v1898
    // Predicated region
    $region30: #{tpu_custom_call.1} parent=1 // pred_check
      _
    $region31: #{tpu_custom_call.1} parent=1 // pred_check_branch
      %1908 = sbr.rel (0) target = $region33
    $region32: #{tpu_custom_call.1} parent=1 // pred_region
      %s1910 = ssub.s32 144, 144
      %1911 = vsyncadd [#allocation4], %s1910
      %s1913 = sshll.u32 [#allocation8], 4
      %s1914 = int_to_ptr.vmem [resolvable:$true] %s1913
      %1916 = dma.vmem_to_hbm [thread:$0]  %s1914, 144, %s4, [#allocation4]
    $region33: #{tpu_custom_call.1} parent=1 // pred_fallthru
      _
    // Predicated region
    $region34: #{tpu_custom_call.1} parent=1 // pred_check
      _
    $region35: #{tpu_custom_call.1} parent=1 // pred_check_branch
      %1918 = sbr.rel (0) target = $region37
    $region36: #{tpu_custom_call.1} parent=1 // pred_region
      %1919 = dma.done [#allocation4], 144
    $region37: #{tpu_custom_call.1} parent=1 // pred_fallthru
      _
    %1920 = vsyncpa [#allocation3], 1
    %1921 = vsyncpa [#allocation6], 1
    %1922 = vsyncpa [#allocation4], 1

</llo_original>
